<compile_context>
chip_gen: v5e
topology: v5e:2x2
jax: 0.10.0
libtpu: 0.0.40
codegen_flags: <defaults>
</compile_context>

<pallas_src>
import functools

import jax
import jax.numpy as jnp
from jax.experimental import pallas as pl
from jax.experimental.pallas import tpu as pltpu


# ----------------------------- Pallas kernel ------------------------------- #
def _gat_layer_kernel(xb_ref, xf_ref, xt_ref, wall_ref, wsrc_ref, wdstt_ref,
                      bias_ref, out_ref, *, num_heads, feat_out, leaky_slope,
                      predict, apply_elu):
    """All heads of one GAT layer for one row block (grid axis 0 = row block).

    xb_ref:    (tq, D_in)      row block of node features (query rows)
    xf_ref:    (N,  D_in)      full node features (keys / values)
    xt_ref:    (D_in, N)       full node features, transposed (wrapper-side)
    wall_ref:  (D_in, H*F)     all-head projection, heads packed along lanes
    wsrc_ref:  (D_in, H)       W_h @ a_src_h packed as columns
    wdstt_ref: (H, D_in)       (W_h @ a_dst_h)^T packed as rows
    bias_ref:  (tq, N)         additive adjacency bias (0 = edge, -1e30 = none)
    out_ref:   (tq, H*F) [concat heads]  or  (tq, F) [mean heads if predict]
    """
    xb = xb_ref[...].astype(jnp.bfloat16)          # (tq, D_in)
    xf = xf_ref[...].astype(jnp.bfloat16)          # (N, D_in)
    xt = xt_ref[...].astype(jnp.bfloat16)          # (D_in, N)
    w_all = wall_ref[...].astype(jnp.bfloat16)     # (D_in, H*F)
    w_src = wsrc_ref[...].astype(jnp.bfloat16)     # (D_in, H)
    w_dst_t = wdstt_ref[...].astype(jnp.bfloat16)  # (H, D_in)
    bias = bias_ref[...]                           # (tq, N)  f32

    # --- MXU: projection for all heads + folded attention-score columns ---
    wh = jnp.dot(xf, w_all, preferred_element_type=jnp.float32)        # (N, H*F)
    wh_bf = wh.astype(jnp.bfloat16)                                     # cast once
    s_src = jnp.dot(xb, w_src, preferred_element_type=jnp.float32)     # (tq, H)
    s_dst = jnp.dot(w_dst_t, xt, preferred_element_type=jnp.float32)   # (H, N)

    # --- per-head masked softmax + aggregation (static unroll, H is small) ---
    head_outs = []
    for h in range(num_heads):
        e = s_src[:, h:h + 1] + s_dst[h:h + 1, :]                      # (tq, N)
        e = jnp.where(e > 0, e, leaky_slope * e)                       # LeakyReLU
        e = e + bias                                                   # mask
        m = jnp.max(e, axis=-1, keepdims=True)
        p = jnp.exp(e - m)
        denom = jnp.sum(p, axis=-1, keepdims=True)
        alpha = p * pl.reciprocal(denom, approx=True)                  # EUP vrcp
        wh_h = wh_bf[:, h * feat_out:(h + 1) * feat_out]               # (N, F)
        head_outs.append(
            jnp.dot(alpha.astype(jnp.bfloat16), wh_h,
                    preferred_element_type=jnp.float32))               # (tq, F)

    if predict:
        out = sum(head_outs) * (1.0 / num_heads)                       # mean heads
    else:
        out = jnp.concatenate(head_outs, axis=-1)                      # concat heads
        if apply_elu:                                                  # fused ELU
            out = jnp.where(out > 0, out, jnp.exp(out) - 1.0)

    out_ref[...] = out.astype(out_ref.dtype)                           # one store


def gat_layer(x, w_all, w_src, w_dst_t, adj_bias, *, predict: bool,
              apply_elu: bool):
    """Single multi-head GAT layer (all heads in one pallas_call).

    x: (N, D_in) f32; w_all: (D_in, H*F); w_src: (D_in, H); w_dst_t: (H, D_in);
    adj_bias: (N, N) additive mask. Returns (N, H*F) if not predict (concat
    heads, optional fused ELU), else (N, F) (mean over heads).
    """
    N, d_in = x.shape
    HF = w_all.shape[1]
    H = w_src.shape[1]
    F = HF // H
    out_dim = F if predict else HF

    tq = 8 if N % 8 == 0 else N          # row-block size (>=2 blocks on v7x)
    n_blocks = N // tq
    xT = x.T                             # (D_in, N), cheap wrapper-side op

    kernel = functools.partial(
        _gat_layer_kernel, num_heads=H, feat_out=F, leaky_slope=0.2,
        predict=predict, apply_elu=apply_elu)

    return pl.pallas_call(
        kernel,
        out_shape=jax.ShapeDtypeStruct((N, out_dim), jnp.float32),
        grid_spec=pltpu.PrefetchScalarGridSpec(
            num_scalar_prefetch=0,
            grid=(n_blocks,),
            in_specs=[
                pl.BlockSpec((tq, d_in), lambda i: (i, 0)),   # x row block
                pl.BlockSpec((N, d_in), lambda i: (0, 0)),    # x full
                pl.BlockSpec((d_in, N), lambda i: (0, 0)),    # x^T full
                pl.BlockSpec((d_in, HF), lambda i: (0, 0)),   # W_all
                pl.BlockSpec((d_in, H), lambda i: (0, 0)),    # W @ a_src
                pl.BlockSpec((H, d_in), lambda i: (0, 0)),    # (W @ a_dst)^T
                pl.BlockSpec((tq, N), lambda i: (i, 0)),      # adj bias rows
            ],
            out_specs=pl.BlockSpec((tq, out_dim), lambda i: (i, 0)),
        ),
        compiler_params=pltpu.CompilerParams(
            dimension_semantics=("parallel",)),
    )(x, x, xT, w_all, w_src, w_dst_t, adj_bias)


# ------------------------------ Model glue --------------------------------- #
def _prep_layer_weights(w, a):
    """Pack per-head weights lane-dense and fold attention vectors into matmuls.

    w: (H, D_in, F), a: (H, 2F) -> (W_all (D_in,H*F), W@a_src (D_in,H),
                                    (W@a_dst)^T (H,D_in))
    """
    H, d_in, F = w.shape
    w_all = jnp.transpose(w, (1, 0, 2)).reshape(d_in, H * F)
    a_src, a_dst = a[:, :F], a[:, F:]
    w_src = jnp.einsum("hdf,hf->dh", w, a_src)     # (D_in, H)
    w_dst_t = jnp.einsum("hdf,hf->hd", w, a_dst)   # (H, D_in)
    return w_all, w_src, w_dst_t


def make_gat_params(key, in_dim, latent_dim, out_dim, num_heads, num_layer):
    """Deterministic parameter init matching the module's layer dims."""
    params = []
    for idx in range(num_layer):
        d_in = in_dim if idx == 0 else num_heads * latent_dim
        d_out = out_dim if idx == num_layer - 1 else latent_dim
        key, kw, ka = jax.random.split(key, 3)
        scale_w = (2.0 / (d_in + d_out)) ** 0.5
        w = scale_w * jax.random.normal(kw, (num_heads, d_in, d_out), jnp.float32)
        a = 0.1 * jax.random.normal(ka, (num_heads, 2 * d_out), jnp.float32)
        params.append((w, a))
    return params


def edges_to_adj_bias(edges, num_nodes):
    """Additive attention bias: 0 on (symmetric) edges + self-loops, -1e30 else."""
    adj = jnp.zeros((num_nodes, num_nodes), jnp.float32)
    src, dst = edges[:, 0], edges[:, 1]
    adj = adj.at[src, dst].set(1.0)
    adj = adj.at[dst, src].set(1.0)
    adj = adj.at[jnp.arange(num_nodes), jnp.arange(num_nodes)].set(1.0)
    return jnp.where(adj > 0, jnp.float32(0.0), jnp.float32(-1e30))


@jax.jit
def gat_forward(x, adj_bias, params):
    # params: tuple of (w, a) per layer. Dropout(p=0.6) -> identity (eval mode).
    n_layers = len(params)
    for i in range(n_layers - 1):
        w_all, w_src, w_dst_t = _prep_layer_weights(*params[i])
        # ELU is fused inside the kernel for hidden layers.
        x = gat_layer(x, w_all, w_src, w_dst_t, adj_bias,
                      predict=False, apply_elu=True)
    w_all, w_src, w_dst_t = _prep_layer_weights(*params[-1])
    # Head-mean for the prediction layer is fused inside the kernel.
    return gat_layer(x, w_all, w_src, w_dst_t, adj_bias,
                     predict=True, apply_elu=False)


# --------------------------------- Main ------------------------------------ #
if __name__ == "__main__":
    # small, module-consistent shapes
    num_nodes = 16
    in_dim = 8
    latent_dim = 8
    out_dim = 4
    num_heads = 4
    num_layer = 3
    num_edges = 32

    key = jax.random.PRNGKey(0)
    k_x, k_e, k_p = jax.random.split(key, 3)

    x = jax.random.normal(k_x, (num_nodes, in_dim), jnp.float32)
    edges = jax.random.randint(k_e, (num_edges, 2), 0, num_nodes, jnp.int32)

    params = tuple(
        make_gat_params(k_p, in_dim, latent_dim, out_dim, num_heads, num_layer)
    )
    adj_bias = edges_to_adj_bias(edges, num_nodes)

    out = gat_forward(x, adj_bias, params)
    out = jax.block_until_ready(out)

    assert out.shape == (num_nodes, out_dim), out.shape
    assert bool(jnp.all(jnp.isfinite(out))), "non-finite output"
    print("KERNEL_OK")
</pallas_src>

<mosaic_0001>
module attributes {stable_mosaic.version = 11 : i64} {
  func.func @_gat_layer_kernel(%arg0: i32, %arg1: memref<8x8xf32, #tpu.memory_space<vmem>>, %arg2: memref<16x8xf32, #tpu.memory_space<vmem>>, %arg3: memref<8x16xf32, #tpu.memory_space<vmem>>, %arg4: memref<8x32xf32, #tpu.memory_space<vmem>>, %arg5: memref<8x4xf32, #tpu.memory_space<vmem>>, %arg6: memref<4x8xf32, #tpu.memory_space<vmem>>, %arg7: memref<8x16xf32, #tpu.memory_space<vmem>>, %arg8: memref<8x32xf32, #tpu.memory_space<vmem>>) attributes {dimension_semantics = [#tpu.dimension_semantics<parallel>], iteration_bounds = array<i64: 2>, scalar_prefetch = 0 : i64, scratch_operands = 0 : i64, tpu.core_type = #tpu.core_type<tc>, window_params = [{transform_indices = @transform_0, window_bounds = array<i64: 8, 8>}, {pipeline_mode = #tpu.pipeline_mode<synchronous>, transform_indices = @transform_1, window_bounds = array<i64: 16, 8>}, {pipeline_mode = #tpu.pipeline_mode<synchronous>, transform_indices = @transform_2, window_bounds = array<i64: 8, 16>}, {pipeline_mode = #tpu.pipeline_mode<synchronous>, transform_indices = @transform_3, window_bounds = array<i64: 8, 32>}, {pipeline_mode = #tpu.pipeline_mode<synchronous>, transform_indices = @transform_4, window_bounds = array<i64: 8, 4>}, {pipeline_mode = #tpu.pipeline_mode<synchronous>, transform_indices = @transform_5, window_bounds = array<i64: 4, 8>}, {transform_indices = @transform_6, window_bounds = array<i64: 8, 16>}, {transform_indices = @transform_7, window_bounds = array<i64: 8, 32>}]} {
    %c0 = arith.constant 0 : index
    %c0_0 = arith.constant 0 : index
    %0 = vector.load %arg1[%c0, %c0_0] : memref<8x8xf32, #tpu.memory_space<vmem>>, vector<8x8xf32>
    %1 = arith.truncf %0 : vector<8x8xf32> to vector<8x8xbf16>
    %c0_1 = arith.constant 0 : index
    %c0_2 = arith.constant 0 : index
    %2 = vector.load %arg2[%c0_1, %c0_2] : memref<16x8xf32, #tpu.memory_space<vmem>>, vector<16x8xf32>
    %3 = arith.truncf %2 : vector<16x8xf32> to vector<16x8xbf16>
    %c0_3 = arith.constant 0 : index
    %c0_4 = arith.constant 0 : index
    %4 = vector.load %arg3[%c0_3, %c0_4] : memref<8x16xf32, #tpu.memory_space<vmem>>, vector<8x16xf32>
    %5 = arith.truncf %4 : vector<8x16xf32> to vector<8x16xbf16>
    %c0_5 = arith.constant 0 : index
    %c0_6 = arith.constant 0 : index
    %6 = vector.load %arg4[%c0_5, %c0_6] : memref<8x32xf32, #tpu.memory_space<vmem>>, vector<8x32xf32>
    %7 = arith.truncf %6 : vector<8x32xf32> to vector<8x32xbf16>
    %c0_7 = arith.constant 0 : index
    %c0_8 = arith.constant 0 : index
    %8 = vector.load %arg5[%c0_7, %c0_8] : memref<8x4xf32, #tpu.memory_space<vmem>>, vector<8x4xf32>
    %9 = arith.truncf %8 : vector<8x4xf32> to vector<8x4xbf16>
    %c0_9 = arith.constant 0 : index
    %c0_10 = arith.constant 0 : index
    %10 = vector.load %arg6[%c0_9, %c0_10] : memref<4x8xf32, #tpu.memory_space<vmem>>, vector<4x8xf32>
    %11 = arith.truncf %10 : vector<4x8xf32> to vector<4x8xbf16>
    %c0_11 = arith.constant 0 : index
    %c0_12 = arith.constant 0 : index
    %12 = vector.load %arg7[%c0_11, %c0_12] : memref<8x16xf32, #tpu.memory_space<vmem>>, vector<8x16xf32>
    %cst = arith.constant dense<0.000000e+00> : vector<16x32xf32>
    %13 = tpu.matmul %3, %7, %cst {dimension_numbers = #tpu.dot_dimension_numbers<[1], [0], [0], [1], [0, 0, 1, 1], [], []>} : vector<16x8xbf16>, vector<8x32xbf16>, vector<16x32xf32> -> vector<16x32xf32>
    %14 = arith.truncf %13 : vector<16x32xf32> to vector<16x32xbf16>
    %cst_13 = arith.constant dense<0.000000e+00> : vector<8x4xf32>
    %15 = tpu.matmul %1, %9, %cst_13 {dimension_numbers = #tpu.dot_dimension_numbers<[1], [0], [0], [1], [0, 0, 1, 1], [], []>} : vector<8x8xbf16>, vector<8x4xbf16>, vector<8x4xf32> -> vector<8x4xf32>
    %cst_14 = arith.constant dense<0.000000e+00> : vector<4x16xf32>
    %16 = tpu.matmul %11, %5, %cst_14 {dimension_numbers = #tpu.dot_dimension_numbers<[1], [0], [0], [1], [0, 0, 1, 1], [], []>} : vector<4x8xbf16>, vector<8x16xbf16>, vector<4x16xf32> -> vector<4x16xf32>
    %17 = vector.extract_strided_slice %15 {offsets = [0, 0], sizes = [8, 1], strides = [1, 1]} : vector<8x4xf32> to vector<8x1xf32>
    %18 = vector.extract_strided_slice %16 {offsets = [0, 0], sizes = [1, 16], strides = [1, 1]} : vector<4x16xf32> to vector<1x16xf32>
    %19 = vector.broadcast %17 : vector<8x1xf32> to vector<8x16xf32>
    %20 = vector.broadcast %18 : vector<1x16xf32> to vector<8x16xf32>
    %21 = arith.addf %19, %20 : vector<8x16xf32>
    %cst_15 = arith.constant 0.000000e+00 : f32
    %22 = vector.broadcast %cst_15 : f32 to vector<8x16xf32>
    %23 = arith.cmpf ogt, %21, %22 : vector<8x16xf32>
    %cst_16 = arith.constant 2.000000e-01 : f32
    %24 = vector.broadcast %cst_16 : f32 to vector<8x16xf32>
    %25 = arith.mulf %24, %21 : vector<8x16xf32>
    %26 = arith.select %23, %21, %25 : vector<8x16xi1>, vector<8x16xf32>
    %27 = arith.addf %26, %12 : vector<8x16xf32>
    %cst_17 = arith.constant dense<0xFF800000> : vector<8xf32>
    %28 = vector.multi_reduction <maximumf>, %27, %cst_17 [1] : vector<8x16xf32> to vector<8xf32>
    %29 = vector.shape_cast %28 : vector<8xf32> to vector<8x1xf32>
    %30 = vector.broadcast %29 : vector<8x1xf32> to vector<8x16xf32>
    %31 = arith.subf %27, %30 : vector<8x16xf32>
    %32 = math.exp %31 : vector<8x16xf32>
    %cst_18 = arith.constant dense<0.000000e+00> : vector<8xf32>
    %33 = vector.multi_reduction <add>, %32, %cst_18 [1] : vector<8x16xf32> to vector<8xf32>
    %34 = vector.shape_cast %33 : vector<8xf32> to vector<8x1xf32>
    %35 = tpu.reciprocal %34 {approx = true} : vector<8x1xf32> -> vector<8x1xf32>
    %36 = vector.broadcast %35 : vector<8x1xf32> to vector<8x16xf32>
    %37 = arith.mulf %32, %36 : vector<8x16xf32>
    %38 = vector.extract_strided_slice %14 {offsets = [0, 0], sizes = [16, 8], strides = [1, 1]} : vector<16x32xbf16> to vector<16x8xbf16>
    %39 = arith.truncf %37 : vector<8x16xf32> to vector<8x16xbf16>
    %cst_19 = arith.constant dense<0.000000e+00> : vector<8x8xf32>
    %40 = tpu.matmul %39, %38, %cst_19 {dimension_numbers = #tpu.dot_dimension_numbers<[1], [0], [0], [1], [0, 0, 1, 1], [], []>} : vector<8x16xbf16>, vector<16x8xbf16>, vector<8x8xf32> -> vector<8x8xf32>
    %41 = vector.extract_strided_slice %15 {offsets = [0, 1], sizes = [8, 1], strides = [1, 1]} : vector<8x4xf32> to vector<8x1xf32>
    %42 = vector.extract_strided_slice %16 {offsets = [1, 0], sizes = [1, 16], strides = [1, 1]} : vector<4x16xf32> to vector<1x16xf32>
    %43 = vector.broadcast %41 : vector<8x1xf32> to vector<8x16xf32>
    %44 = vector.broadcast %42 : vector<1x16xf32> to vector<8x16xf32>
    %45 = arith.addf %43, %44 : vector<8x16xf32>
    %cst_20 = arith.constant 0.000000e+00 : f32
    %46 = vector.broadcast %cst_20 : f32 to vector<8x16xf32>
    %47 = arith.cmpf ogt, %45, %46 : vector<8x16xf32>
    %cst_21 = arith.constant 2.000000e-01 : f32
    %48 = vector.broadcast %cst_21 : f32 to vector<8x16xf32>
    %49 = arith.mulf %48, %45 : vector<8x16xf32>
    %50 = arith.select %47, %45, %49 : vector<8x16xi1>, vector<8x16xf32>
    %51 = arith.addf %50, %12 : vector<8x16xf32>
    %cst_22 = arith.constant dense<0xFF800000> : vector<8xf32>
    %52 = vector.multi_reduction <maximumf>, %51, %cst_22 [1] : vector<8x16xf32> to vector<8xf32>
    %53 = vector.shape_cast %52 : vector<8xf32> to vector<8x1xf32>
    %54 = vector.broadcast %53 : vector<8x1xf32> to vector<8x16xf32>
    %55 = arith.subf %51, %54 : vector<8x16xf32>
    %56 = math.exp %55 : vector<8x16xf32>
    %cst_23 = arith.constant dense<0.000000e+00> : vector<8xf32>
    %57 = vector.multi_reduction <add>, %56, %cst_23 [1] : vector<8x16xf32> to vector<8xf32>
    %58 = vector.shape_cast %57 : vector<8xf32> to vector<8x1xf32>
    %59 = tpu.reciprocal %58 {approx = true} : vector<8x1xf32> -> vector<8x1xf32>
    %60 = vector.broadcast %59 : vector<8x1xf32> to vector<8x16xf32>
    %61 = arith.mulf %56, %60 : vector<8x16xf32>
    %62 = vector.extract_strided_slice %14 {offsets = [0, 8], sizes = [16, 8], strides = [1, 1]} : vector<16x32xbf16> to vector<16x8xbf16>
    %63 = arith.truncf %61 : vector<8x16xf32> to vector<8x16xbf16>
    %cst_24 = arith.constant dense<0.000000e+00> : vector<8x8xf32>
    %64 = tpu.matmul %63, %62, %cst_24 {dimension_numbers = #tpu.dot_dimension_numbers<[1], [0], [0], [1], [0, 0, 1, 1], [], []>} : vector<8x16xbf16>, vector<16x8xbf16>, vector<8x8xf32> -> vector<8x8xf32>
    %65 = vector.extract_strided_slice %15 {offsets = [0, 2], sizes = [8, 1], strides = [1, 1]} : vector<8x4xf32> to vector<8x1xf32>
    %66 = vector.extract_strided_slice %16 {offsets = [2, 0], sizes = [1, 16], strides = [1, 1]} : vector<4x16xf32> to vector<1x16xf32>
    %67 = vector.broadcast %65 : vector<8x1xf32> to vector<8x16xf32>
    %68 = vector.broadcast %66 : vector<1x16xf32> to vector<8x16xf32>
    %69 = arith.addf %67, %68 : vector<8x16xf32>
    %cst_25 = arith.constant 0.000000e+00 : f32
    %70 = vector.broadcast %cst_25 : f32 to vector<8x16xf32>
    %71 = arith.cmpf ogt, %69, %70 : vector<8x16xf32>
    %cst_26 = arith.constant 2.000000e-01 : f32
    %72 = vector.broadcast %cst_26 : f32 to vector<8x16xf32>
    %73 = arith.mulf %72, %69 : vector<8x16xf32>
    %74 = arith.select %71, %69, %73 : vector<8x16xi1>, vector<8x16xf32>
    %75 = arith.addf %74, %12 : vector<8x16xf32>
    %cst_27 = arith.constant dense<0xFF800000> : vector<8xf32>
    %76 = vector.multi_reduction <maximumf>, %75, %cst_27 [1] : vector<8x16xf32> to vector<8xf32>
    %77 = vector.shape_cast %76 : vector<8xf32> to vector<8x1xf32>
    %78 = vector.broadcast %77 : vector<8x1xf32> to vector<8x16xf32>
    %79 = arith.subf %75, %78 : vector<8x16xf32>
    %80 = math.exp %79 : vector<8x16xf32>
    %cst_28 = arith.constant dense<0.000000e+00> : vector<8xf32>
    %81 = vector.multi_reduction <add>, %80, %cst_28 [1] : vector<8x16xf32> to vector<8xf32>
    %82 = vector.shape_cast %81 : vector<8xf32> to vector<8x1xf32>
    %83 = tpu.reciprocal %82 {approx = true} : vector<8x1xf32> -> vector<8x1xf32>
    %84 = vector.broadcast %83 : vector<8x1xf32> to vector<8x16xf32>
    %85 = arith.mulf %80, %84 : vector<8x16xf32>
    %86 = vector.extract_strided_slice %14 {offsets = [0, 16], sizes = [16, 8], strides = [1, 1]} : vector<16x32xbf16> to vector<16x8xbf16>
    %87 = arith.truncf %85 : vector<8x16xf32> to vector<8x16xbf16>
    %cst_29 = arith.constant dense<0.000000e+00> : vector<8x8xf32>
    %88 = tpu.matmul %87, %86, %cst_29 {dimension_numbers = #tpu.dot_dimension_numbers<[1], [0], [0], [1], [0, 0, 1, 1], [], []>} : vector<8x16xbf16>, vector<16x8xbf16>, vector<8x8xf32> -> vector<8x8xf32>
    %89 = vector.extract_strided_slice %15 {offsets = [0, 3], sizes = [8, 1], strides = [1, 1]} : vector<8x4xf32> to vector<8x1xf32>
    %90 = vector.extract_strided_slice %16 {offsets = [3, 0], sizes = [1, 16], strides = [1, 1]} : vector<4x16xf32> to vector<1x16xf32>
    %91 = vector.broadcast %89 : vector<8x1xf32> to vector<8x16xf32>
    %92 = vector.broadcast %90 : vector<1x16xf32> to vector<8x16xf32>
    %93 = arith.addf %91, %92 : vector<8x16xf32>
    %cst_30 = arith.constant 0.000000e+00 : f32
    %94 = vector.broadcast %cst_30 : f32 to vector<8x16xf32>
    %95 = arith.cmpf ogt, %93, %94 : vector<8x16xf32>
    %cst_31 = arith.constant 2.000000e-01 : f32
    %96 = vector.broadcast %cst_31 : f32 to vector<8x16xf32>
    %97 = arith.mulf %96, %93 : vector<8x16xf32>
    %98 = arith.select %95, %93, %97 : vector<8x16xi1>, vector<8x16xf32>
    %99 = arith.addf %98, %12 : vector<8x16xf32>
    %cst_32 = arith.constant dense<0xFF800000> : vector<8xf32>
    %100 = vector.multi_reduction <maximumf>, %99, %cst_32 [1] : vector<8x16xf32> to vector<8xf32>
    %101 = vector.shape_cast %100 : vector<8xf32> to vector<8x1xf32>
    %102 = vector.broadcast %101 : vector<8x1xf32> to vector<8x16xf32>
    %103 = arith.subf %99, %102 : vector<8x16xf32>
    %104 = math.exp %103 : vector<8x16xf32>
    %cst_33 = arith.constant dense<0.000000e+00> : vector<8xf32>
    %105 = vector.multi_reduction <add>, %104, %cst_33 [1] : vector<8x16xf32> to vector<8xf32>
    %106 = vector.shape_cast %105 : vector<8xf32> to vector<8x1xf32>
    %107 = tpu.reciprocal %106 {approx = true} : vector<8x1xf32> -> vector<8x1xf32>
    %108 = vector.broadcast %107 : vector<8x1xf32> to vector<8x16xf32>
    %109 = arith.mulf %104, %108 : vector<8x16xf32>
    %110 = vector.extract_strided_slice %14 {offsets = [0, 24], sizes = [16, 8], strides = [1, 1]} : vector<16x32xbf16> to vector<16x8xbf16>
    %111 = arith.truncf %109 : vector<8x16xf32> to vector<8x16xbf16>
    %cst_34 = arith.constant dense<0.000000e+00> : vector<8x8xf32>
    %112 = tpu.matmul %111, %110, %cst_34 {dimension_numbers = #tpu.dot_dimension_numbers<[1], [0], [0], [1], [0, 0, 1, 1], [], []>} : vector<8x16xbf16>, vector<16x8xbf16>, vector<8x8xf32> -> vector<8x8xf32>
    %113 = tpu.concatenate %40, %64, %88, %112 in 1 : vector<8x8xf32>, vector<8x8xf32>, vector<8x8xf32>, vector<8x8xf32> -> vector<8x32xf32>
    %cst_35 = arith.constant 0.000000e+00 : f32
    %114 = vector.broadcast %cst_35 : f32 to vector<8x32xf32>
    %115 = arith.cmpf ogt, %113, %114 : vector<8x32xf32>
    %116 = math.exp %113 : vector<8x32xf32>
    %cst_36 = arith.constant 1.000000e+00 : f32
    %117 = vector.broadcast %cst_36 : f32 to vector<8x32xf32>
    %118 = arith.subf %116, %117 : vector<8x32xf32>
    %119 = arith.select %115, %113, %118 : vector<8x32xi1>, vector<8x32xf32>
    %c0_37 = arith.constant 0 : index
    %c0_38 = arith.constant 0 : index
    %120 = vector.load %arg8[%c0_37, %c0_38] : memref<8x32xf32, #tpu.memory_space<vmem>>, vector<8x32xf32>
    tpu.vector_store %arg8[%c0_37, %c0_38], %119 {strides = array<i32>} : memref<8x32xf32, #tpu.memory_space<vmem>>, vector<8x32xf32>,
    return
  }
  func.func @transform_0(%arg0: i32) -> (i32, i32) {
    %c0_i32 = arith.constant 0 : i32
    %c0_i32_0 = arith.constant 0 : i32
    return %arg0, %c0_i32 : i32, i32
  }
  func.func @transform_1(%arg0: i32) -> (i32, i32) {
    %c0_i32 = arith.constant 0 : i32
    %c0_i32_0 = arith.constant 0 : i32
    %c0_i32_1 = arith.constant 0 : i32
    return %c0_i32, %c0_i32_0 : i32, i32
  }
  func.func @transform_2(%arg0: i32) -> (i32, i32) {
    %c0_i32 = arith.constant 0 : i32
    %c0_i32_0 = arith.constant 0 : i32
    %c0_i32_1 = arith.constant 0 : i32
    return %c0_i32, %c0_i32_0 : i32, i32
  }
  func.func @transform_3(%arg0: i32) -> (i32, i32) {
    %c0_i32 = arith.constant 0 : i32
    %c0_i32_0 = arith.constant 0 : i32
    %c0_i32_1 = arith.constant 0 : i32
    return %c0_i32, %c0_i32_0 : i32, i32
  }
  func.func @transform_4(%arg0: i32) -> (i32, i32) {
    %c0_i32 = arith.constant 0 : i32
    %c0_i32_0 = arith.constant 0 : i32
    %c0_i32_1 = arith.constant 0 : i32
    return %c0_i32, %c0_i32_0 : i32, i32
  }
  func.func @transform_5(%arg0: i32) -> (i32, i32) {
    %c0_i32 = arith.constant 0 : i32
    %c0_i32_0 = arith.constant 0 : i32
    %c0_i32_1 = arith.constant 0 : i32
    return %c0_i32, %c0_i32_0 : i32, i32
  }
  func.func @transform_6(%arg0: i32) -> (i32, i32) {
    %c0_i32 = arith.constant 0 : i32
    %c0_i32_0 = arith.constant 0 : i32
    return %arg0, %c0_i32 : i32, i32
  }
  func.func @transform_7(%arg0: i32) -> (i32, i32) {
    %c0_i32 = arith.constant 0 : i32
    %c0_i32_0 = arith.constant 0 : i32
    return %arg0, %c0_i32 : i32, i32
  }
}

module attributes {stable_mosaic.version = 11 : i64} {
  func.func @_gat_layer_kernel(%arg0: i32, %arg1: memref<8x32xf32, #tpu.memory_space<vmem>>, %arg2: memref<16x32xf32, #tpu.memory_space<vmem>>, %arg3: memref<32x16xf32, #tpu.memory_space<vmem>>, %arg4: memref<32x32xf32, #tpu.memory_space<vmem>>, %arg5: memref<32x4xf32, #tpu.memory_space<vmem>>, %arg6: memref<4x32xf32, #tpu.memory_space<vmem>>, %arg7: memref<8x16xf32, #tpu.memory_space<vmem>>, %arg8: memref<8x32xf32, #tpu.memory_space<vmem>>) attributes {dimension_semantics = [#tpu.dimension_semantics<parallel>], iteration_bounds = array<i64: 2>, scalar_prefetch = 0 : i64, scratch_operands = 0 : i64, tpu.core_type = #tpu.core_type<tc>, window_params = [{transform_indices = @transform_0, window_bounds = array<i64: 8, 32>}, {pipeline_mode = #tpu.pipeline_mode<synchronous>, transform_indices = @transform_1, window_bounds = array<i64: 16, 32>}, {pipeline_mode = #tpu.pipeline_mode<synchronous>, transform_indices = @transform_2, window_bounds = array<i64: 32, 16>}, {pipeline_mode = #tpu.pipeline_mode<synchronous>, transform_indices = @transform_3, window_bounds = array<i64: 32, 32>}, {pipeline_mode = #tpu.pipeline_mode<synchronous>, transform_indices = @transform_4, window_bounds = array<i64: 32, 4>}, {pipeline_mode = #tpu.pipeline_mode<synchronous>, transform_indices = @transform_5, window_bounds = array<i64: 4, 32>}, {transform_indices = @transform_6, window_bounds = array<i64: 8, 16>}, {transform_indices = @transform_7, window_bounds = array<i64: 8, 32>}]} {
    %c0 = arith.constant 0 : index
    %c0_0 = arith.constant 0 : index
    %0 = vector.load %arg1[%c0, %c0_0] : memref<8x32xf32, #tpu.memory_space<vmem>>, vector<8x32xf32>
    %1 = arith.truncf %0 : vector<8x32xf32> to vector<8x32xbf16>
    %c0_1 = arith.constant 0 : index
    %c0_2 = arith.constant 0 : index
    %2 = vector.load %arg2[%c0_1, %c0_2] : memref<16x32xf32, #tpu.memory_space<vmem>>, vector<16x32xf32>
    %3 = arith.truncf %2 : vector<16x32xf32> to vector<16x32xbf16>
    %c0_3 = arith.constant 0 : index
    %c0_4 = arith.constant 0 : index
    %4 = vector.load %arg3[%c0_3, %c0_4] : memref<32x16xf32, #tpu.memory_space<vmem>>, vector<32x16xf32>
    %5 = arith.truncf %4 : vector<32x16xf32> to vector<32x16xbf16>
    %c0_5 = arith.constant 0 : index
    %c0_6 = arith.constant 0 : index
    %6 = vector.load %arg4[%c0_5, %c0_6] : memref<32x32xf32, #tpu.memory_space<vmem>>, vector<32x32xf32>
    %7 = arith.truncf %6 : vector<32x32xf32> to vector<32x32xbf16>
    %c0_7 = arith.constant 0 : index
    %c0_8 = arith.constant 0 : index
    %8 = vector.load %arg5[%c0_7, %c0_8] : memref<32x4xf32, #tpu.memory_space<vmem>>, vector<32x4xf32>
    %9 = arith.truncf %8 : vector<32x4xf32> to vector<32x4xbf16>
    %c0_9 = arith.constant 0 : index
    %c0_10 = arith.constant 0 : index
    %10 = vector.load %arg6[%c0_9, %c0_10] : memref<4x32xf32, #tpu.memory_space<vmem>>, vector<4x32xf32>
    %11 = arith.truncf %10 : vector<4x32xf32> to vector<4x32xbf16>
    %c0_11 = arith.constant 0 : index
    %c0_12 = arith.constant 0 : index
    %12 = vector.load %arg7[%c0_11, %c0_12] : memref<8x16xf32, #tpu.memory_space<vmem>>, vector<8x16xf32>
    %cst = arith.constant dense<0.000000e+00> : vector<16x32xf32>
    %13 = tpu.matmul %3, %7, %cst {dimension_numbers = #tpu.dot_dimension_numbers<[1], [0], [0], [1], [0, 0, 1, 1], [], []>} : vector<16x32xbf16>, vector<32x32xbf16>, vector<16x32xf32> -> vector<16x32xf32>
    %14 = arith.truncf %13 : vector<16x32xf32> to vector<16x32xbf16>
    %cst_13 = arith.constant dense<0.000000e+00> : vector<8x4xf32>
    %15 = tpu.matmul %1, %9, %cst_13 {dimension_numbers = #tpu.dot_dimension_numbers<[1], [0], [0], [1], [0, 0, 1, 1], [], []>} : vector<8x32xbf16>, vector<32x4xbf16>, vector<8x4xf32> -> vector<8x4xf32>
    %cst_14 = arith.constant dense<0.000000e+00> : vector<4x16xf32>
    %16 = tpu.matmul %11, %5, %cst_14 {dimension_numbers = #tpu.dot_dimension_numbers<[1], [0], [0], [1], [0, 0, 1, 1], [], []>} : vector<4x32xbf16>, vector<32x16xbf16>, vector<4x16xf32> -> vector<4x16xf32>
    %17 = vector.extract_strided_slice %15 {offsets = [0, 0], sizes = [8, 1], strides = [1, 1]} : vector<8x4xf32> to vector<8x1xf32>
    %18 = vector.extract_strided_slice %16 {offsets = [0, 0], sizes = [1, 16], strides = [1, 1]} : vector<4x16xf32> to vector<1x16xf32>
    %19 = vector.broadcast %17 : vector<8x1xf32> to vector<8x16xf32>
    %20 = vector.broadcast %18 : vector<1x16xf32> to vector<8x16xf32>
    %21 = arith.addf %19, %20 : vector<8x16xf32>
    %cst_15 = arith.constant 0.000000e+00 : f32
    %22 = vector.broadcast %cst_15 : f32 to vector<8x16xf32>
    %23 = arith.cmpf ogt, %21, %22 : vector<8x16xf32>
    %cst_16 = arith.constant 2.000000e-01 : f32
    %24 = vector.broadcast %cst_16 : f32 to vector<8x16xf32>
    %25 = arith.mulf %24, %21 : vector<8x16xf32>
    %26 = arith.select %23, %21, %25 : vector<8x16xi1>, vector<8x16xf32>
    %27 = arith.addf %26, %12 : vector<8x16xf32>
    %cst_17 = arith.constant dense<0xFF800000> : vector<8xf32>
    %28 = vector.multi_reduction <maximumf>, %27, %cst_17 [1] : vector<8x16xf32> to vector<8xf32>
    %29 = vector.shape_cast %28 : vector<8xf32> to vector<8x1xf32>
    %30 = vector.broadcast %29 : vector<8x1xf32> to vector<8x16xf32>
    %31 = arith.subf %27, %30 : vector<8x16xf32>
    %32 = math.exp %31 : vector<8x16xf32>
    %cst_18 = arith.constant dense<0.000000e+00> : vector<8xf32>
    %33 = vector.multi_reduction <add>, %32, %cst_18 [1] : vector<8x16xf32> to vector<8xf32>
    %34 = vector.shape_cast %33 : vector<8xf32> to vector<8x1xf32>
    %35 = tpu.reciprocal %34 {approx = true} : vector<8x1xf32> -> vector<8x1xf32>
    %36 = vector.broadcast %35 : vector<8x1xf32> to vector<8x16xf32>
    %37 = arith.mulf %32, %36 : vector<8x16xf32>
    %38 = vector.extract_strided_slice %14 {offsets = [0, 0], sizes = [16, 8], strides = [1, 1]} : vector<16x32xbf16> to vector<16x8xbf16>
    %39 = arith.truncf %37 : vector<8x16xf32> to vector<8x16xbf16>
    %cst_19 = arith.constant dense<0.000000e+00> : vector<8x8xf32>
    %40 = tpu.matmul %39, %38, %cst_19 {dimension_numbers = #tpu.dot_dimension_numbers<[1], [0], [0], [1], [0, 0, 1, 1], [], []>} : vector<8x16xbf16>, vector<16x8xbf16>, vector<8x8xf32> -> vector<8x8xf32>
    %41 = vector.extract_strided_slice %15 {offsets = [0, 1], sizes = [8, 1], strides = [1, 1]} : vector<8x4xf32> to vector<8x1xf32>
    %42 = vector.extract_strided_slice %16 {offsets = [1, 0], sizes = [1, 16], strides = [1, 1]} : vector<4x16xf32> to vector<1x16xf32>
    %43 = vector.broadcast %41 : vector<8x1xf32> to vector<8x16xf32>
    %44 = vector.broadcast %42 : vector<1x16xf32> to vector<8x16xf32>
    %45 = arith.addf %43, %44 : vector<8x16xf32>
    %cst_20 = arith.constant 0.000000e+00 : f32
    %46 = vector.broadcast %cst_20 : f32 to vector<8x16xf32>
    %47 = arith.cmpf ogt, %45, %46 : vector<8x16xf32>
    %cst_21 = arith.constant 2.000000e-01 : f32
    %48 = vector.broadcast %cst_21 : f32 to vector<8x16xf32>
    %49 = arith.mulf %48, %45 : vector<8x16xf32>
    %50 = arith.select %47, %45, %49 : vector<8x16xi1>, vector<8x16xf32>
    %51 = arith.addf %50, %12 : vector<8x16xf32>
    %cst_22 = arith.constant dense<0xFF800000> : vector<8xf32>
    %52 = vector.multi_reduction <maximumf>, %51, %cst_22 [1] : vector<8x16xf32> to vector<8xf32>
    %53 = vector.shape_cast %52 : vector<8xf32> to vector<8x1xf32>
    %54 = vector.broadcast %53 : vector<8x1xf32> to vector<8x16xf32>
    %55 = arith.subf %51, %54 : vector<8x16xf32>
    %56 = math.exp %55 : vector<8x16xf32>
    %cst_23 = arith.constant dense<0.000000e+00> : vector<8xf32>
    %57 = vector.multi_reduction <add>, %56, %cst_23 [1] : vector<8x16xf32> to vector<8xf32>
    %58 = vector.shape_cast %57 : vector<8xf32> to vector<8x1xf32>
    %59 = tpu.reciprocal %58 {approx = true} : vector<8x1xf32> -> vector<8x1xf32>
    %60 = vector.broadcast %59 : vector<8x1xf32> to vector<8x16xf32>
    %61 = arith.mulf %56, %60 : vector<8x16xf32>
    %62 = vector.extract_strided_slice %14 {offsets = [0, 8], sizes = [16, 8], strides = [1, 1]} : vector<16x32xbf16> to vector<16x8xbf16>
    %63 = arith.truncf %61 : vector<8x16xf32> to vector<8x16xbf16>
    %cst_24 = arith.constant dense<0.000000e+00> : vector<8x8xf32>
    %64 = tpu.matmul %63, %62, %cst_24 {dimension_numbers = #tpu.dot_dimension_numbers<[1], [0], [0], [1], [0, 0, 1, 1], [], []>} : vector<8x16xbf16>, vector<16x8xbf16>, vector<8x8xf32> -> vector<8x8xf32>
    %65 = vector.extract_strided_slice %15 {offsets = [0, 2], sizes = [8, 1], strides = [1, 1]} : vector<8x4xf32> to vector<8x1xf32>
    %66 = vector.extract_strided_slice %16 {offsets = [2, 0], sizes = [1, 16], strides = [1, 1]} : vector<4x16xf32> to vector<1x16xf32>
    %67 = vector.broadcast %65 : vector<8x1xf32> to vector<8x16xf32>
    %68 = vector.broadcast %66 : vector<1x16xf32> to vector<8x16xf32>
    %69 = arith.addf %67, %68 : vector<8x16xf32>
    %cst_25 = arith.constant 0.000000e+00 : f32
    %70 = vector.broadcast %cst_25 : f32 to vector<8x16xf32>
    %71 = arith.cmpf ogt, %69, %70 : vector<8x16xf32>
    %cst_26 = arith.constant 2.000000e-01 : f32
    %72 = vector.broadcast %cst_26 : f32 to vector<8x16xf32>
    %73 = arith.mulf %72, %69 : vector<8x16xf32>
    %74 = arith.select %71, %69, %73 : vector<8x16xi1>, vector<8x16xf32>
    %75 = arith.addf %74, %12 : vector<8x16xf32>
    %cst_27 = arith.constant dense<0xFF800000> : vector<8xf32>
    %76 = vector.multi_reduction <maximumf>, %75, %cst_27 [1] : vector<8x16xf32> to vector<8xf32>
    %77 = vector.shape_cast %76 : vector<8xf32> to vector<8x1xf32>
    %78 = vector.broadcast %77 : vector<8x1xf32> to vector<8x16xf32>
    %79 = arith.subf %75, %78 : vector<8x16xf32>
    %80 = math.exp %79 : vector<8x16xf32>
    %cst_28 = arith.constant dense<0.000000e+00> : vector<8xf32>
    %81 = vector.multi_reduction <add>, %80, %cst_28 [1] : vector<8x16xf32> to vector<8xf32>
    %82 = vector.shape_cast %81 : vector<8xf32> to vector<8x1xf32>
    %83 = tpu.reciprocal %82 {approx = true} : vector<8x1xf32> -> vector<8x1xf32>
    %84 = vector.broadcast %83 : vector<8x1xf32> to vector<8x16xf32>
    %85 = arith.mulf %80, %84 : vector<8x16xf32>
    %86 = vector.extract_strided_slice %14 {offsets = [0, 16], sizes = [16, 8], strides = [1, 1]} : vector<16x32xbf16> to vector<16x8xbf16>
    %87 = arith.truncf %85 : vector<8x16xf32> to vector<8x16xbf16>
    %cst_29 = arith.constant dense<0.000000e+00> : vector<8x8xf32>
    %88 = tpu.matmul %87, %86, %cst_29 {dimension_numbers = #tpu.dot_dimension_numbers<[1], [0], [0], [1], [0, 0, 1, 1], [], []>} : vector<8x16xbf16>, vector<16x8xbf16>, vector<8x8xf32> -> vector<8x8xf32>
    %89 = vector.extract_strided_slice %15 {offsets = [0, 3], sizes = [8, 1], strides = [1, 1]} : vector<8x4xf32> to vector<8x1xf32>
    %90 = vector.extract_strided_slice %16 {offsets = [3, 0], sizes = [1, 16], strides = [1, 1]} : vector<4x16xf32> to vector<1x16xf32>
    %91 = vector.broadcast %89 : vector<8x1xf32> to vector<8x16xf32>
    %92 = vector.broadcast %90 : vector<1x16xf32> to vector<8x16xf32>
    %93 = arith.addf %91, %92 : vector<8x16xf32>
    %cst_30 = arith.constant 0.000000e+00 : f32
    %94 = vector.broadcast %cst_30 : f32 to vector<8x16xf32>
    %95 = arith.cmpf ogt, %93, %94 : vector<8x16xf32>
    %cst_31 = arith.constant 2.000000e-01 : f32
    %96 = vector.broadcast %cst_31 : f32 to vector<8x16xf32>
    %97 = arith.mulf %96, %93 : vector<8x16xf32>
    %98 = arith.select %95, %93, %97 : vector<8x16xi1>, vector<8x16xf32>
    %99 = arith.addf %98, %12 : vector<8x16xf32>
    %cst_32 = arith.constant dense<0xFF800000> : vector<8xf32>
    %100 = vector.multi_reduction <maximumf>, %99, %cst_32 [1] : vector<8x16xf32> to vector<8xf32>
    %101 = vector.shape_cast %100 : vector<8xf32> to vector<8x1xf32>
    %102 = vector.broadcast %101 : vector<8x1xf32> to vector<8x16xf32>
    %103 = arith.subf %99, %102 : vector<8x16xf32>
    %104 = math.exp %103 : vector<8x16xf32>
    %cst_33 = arith.constant dense<0.000000e+00> : vector<8xf32>
    %105 = vector.multi_reduction <add>, %104, %cst_33 [1] : vector<8x16xf32> to vector<8xf32>
    %106 = vector.shape_cast %105 : vector<8xf32> to vector<8x1xf32>
    %107 = tpu.reciprocal %106 {approx = true} : vector<8x1xf32> -> vector<8x1xf32>
    %108 = vector.broadcast %107 : vector<8x1xf32> to vector<8x16xf32>
    %109 = arith.mulf %104, %108 : vector<8x16xf32>
    %110 = vector.extract_strided_slice %14 {offsets = [0, 24], sizes = [16, 8], strides = [1, 1]} : vector<16x32xbf16> to vector<16x8xbf16>
    %111 = arith.truncf %109 : vector<8x16xf32> to vector<8x16xbf16>
    %cst_34 = arith.constant dense<0.000000e+00> : vector<8x8xf32>
    %112 = tpu.matmul %111, %110, %cst_34 {dimension_numbers = #tpu.dot_dimension_numbers<[1], [0], [0], [1], [0, 0, 1, 1], [], []>} : vector<8x16xbf16>, vector<16x8xbf16>, vector<8x8xf32> -> vector<8x8xf32>
    %113 = tpu.concatenate %40, %64, %88, %112 in 1 : vector<8x8xf32>, vector<8x8xf32>, vector<8x8xf32>, vector<8x8xf32> -> vector<8x32xf32>
    %cst_35 = arith.constant 0.000000e+00 : f32
    %114 = vector.broadcast %cst_35 : f32 to vector<8x32xf32>
    %115 = arith.cmpf ogt, %113, %114 : vector<8x32xf32>
    %116 = math.exp %113 : vector<8x32xf32>
    %cst_36 = arith.constant 1.000000e+00 : f32
    %117 = vector.broadcast %cst_36 : f32 to vector<8x32xf32>
    %118 = arith.subf %116, %117 : vector<8x32xf32>
    %119 = arith.select %115, %113, %118 : vector<8x32xi1>, vector<8x32xf32>
    %c0_37 = arith.constant 0 : index
    %c0_38 = arith.constant 0 : index
    %120 = vector.load %arg8[%c0_37, %c0_38] : memref<8x32xf32, #tpu.memory_space<vmem>>, vector<8x32xf32>
    tpu.vector_store %arg8[%c0_37, %c0_38], %119 {strides = array<i32>} : memref<8x32xf32, #tpu.memory_space<vmem>>, vector<8x32xf32>,
    return
  }
  func.func @transform_0(%arg0: i32) -> (i32, i32) {
    %c0_i32 = arith.constant 0 : i32
    %c0_i32_0 = arith.constant 0 : i32
    return %arg0, %c0_i32 : i32, i32
  }
  func.func @transform_1(%arg0: i32) -> (i32, i32) {
    %c0_i32 = arith.constant 0 : i32
    %c0_i32_0 = arith.constant 0 : i32
    %c0_i32_1 = arith.constant 0 : i32
    return %c0_i32, %c0_i32_0 : i32, i32
  }
  func.func @transform_2(%arg0: i32) -> (i32, i32) {
    %c0_i32 = arith.constant 0 : i32
    %c0_i32_0 = arith.constant 0 : i32
    %c0_i32_1 = arith.constant 0 : i32
    return %c0_i32, %c0_i32_0 : i32, i32
  }
  func.func @transform_3(%arg0: i32) -> (i32, i32) {
    %c0_i32 = arith.constant 0 : i32
    %c0_i32_0 = arith.constant 0 : i32
    %c0_i32_1 = arith.constant 0 : i32
    return %c0_i32, %c0_i32_0 : i32, i32
  }
  func.func @transform_4(%arg0: i32) -> (i32, i32) {
    %c0_i32 = arith.constant 0 : i32
    %c0_i32_0 = arith.constant 0 : i32
    %c0_i32_1 = arith.constant 0 : i32
    return %c0_i32, %c0_i32_0 : i32, i32
  }
  func.func @transform_5(%arg0: i32) -> (i32, i32) {
    %c0_i32 = arith.constant 0 : i32
    %c0_i32_0 = arith.constant 0 : i32
    %c0_i32_1 = arith.constant 0 : i32
    return %c0_i32, %c0_i32_0 : i32, i32
  }
  func.func @transform_6(%arg0: i32) -> (i32, i32) {
    %c0_i32 = arith.constant 0 : i32
    %c0_i32_0 = arith.constant 0 : i32
    return %arg0, %c0_i32 : i32, i32
  }
  func.func @transform_7(%arg0: i32) -> (i32, i32) {
    %c0_i32 = arith.constant 0 : i32
    %c0_i32_0 = arith.constant 0 : i32
    return %arg0, %c0_i32 : i32, i32
  }
}

module attributes {stable_mosaic.version = 11 : i64} {
  func.func @_gat_layer_kernel(%arg0: i32, %arg1: memref<8x32xf32, #tpu.memory_space<vmem>>, %arg2: memref<16x32xf32, #tpu.memory_space<vmem>>, %arg3: memref<32x16xf32, #tpu.memory_space<vmem>>, %arg4: memref<32x16xf32, #tpu.memory_space<vmem>>, %arg5: memref<32x4xf32, #tpu.memory_space<vmem>>, %arg6: memref<4x32xf32, #tpu.memory_space<vmem>>, %arg7: memref<8x16xf32, #tpu.memory_space<vmem>>, %arg8: memref<8x4xf32, #tpu.memory_space<vmem>>) attributes {dimension_semantics = [#tpu.dimension_semantics<parallel>], iteration_bounds = array<i64: 2>, scalar_prefetch = 0 : i64, scratch_operands = 0 : i64, tpu.core_type = #tpu.core_type<tc>, window_params = [{transform_indices = @transform_0, window_bounds = array<i64: 8, 32>}, {pipeline_mode = #tpu.pipeline_mode<synchronous>, transform_indices = @transform_1, window_bounds = array<i64: 16, 32>}, {pipeline_mode = #tpu.pipeline_mode<synchronous>, transform_indices = @transform_2, window_bounds = array<i64: 32, 16>}, {pipeline_mode = #tpu.pipeline_mode<synchronous>, transform_indices = @transform_3, window_bounds = array<i64: 32, 16>}, {pipeline_mode = #tpu.pipeline_mode<synchronous>, transform_indices = @transform_4, window_bounds = array<i64: 32, 4>}, {pipeline_mode = #tpu.pipeline_mode<synchronous>, transform_indices = @transform_5, window_bounds = array<i64: 4, 32>}, {transform_indices = @transform_6, window_bounds = array<i64: 8, 16>}, {transform_indices = @transform_7, window_bounds = array<i64: 8, 4>}]} {
    %c0 = arith.constant 0 : index
    %c0_0 = arith.constant 0 : index
    %0 = vector.load %arg1[%c0, %c0_0] : memref<8x32xf32, #tpu.memory_space<vmem>>, vector<8x32xf32>
    %1 = arith.truncf %0 : vector<8x32xf32> to vector<8x32xbf16>
    %c0_1 = arith.constant 0 : index
    %c0_2 = arith.constant 0 : index
    %2 = vector.load %arg2[%c0_1, %c0_2] : memref<16x32xf32, #tpu.memory_space<vmem>>, vector<16x32xf32>
    %3 = arith.truncf %2 : vector<16x32xf32> to vector<16x32xbf16>
    %c0_3 = arith.constant 0 : index
    %c0_4 = arith.constant 0 : index
    %4 = vector.load %arg3[%c0_3, %c0_4] : memref<32x16xf32, #tpu.memory_space<vmem>>, vector<32x16xf32>
    %5 = arith.truncf %4 : vector<32x16xf32> to vector<32x16xbf16>
    %c0_5 = arith.constant 0 : index
    %c0_6 = arith.constant 0 : index
    %6 = vector.load %arg4[%c0_5, %c0_6] : memref<32x16xf32, #tpu.memory_space<vmem>>, vector<32x16xf32>
    %7 = arith.truncf %6 : vector<32x16xf32> to vector<32x16xbf16>
    %c0_7 = arith.constant 0 : index
    %c0_8 = arith.constant 0 : index
    %8 = vector.load %arg5[%c0_7, %c0_8] : memref<32x4xf32, #tpu.memory_space<vmem>>, vector<32x4xf32>
    %9 = arith.truncf %8 : vector<32x4xf32> to vector<32x4xbf16>
    %c0_9 = arith.constant 0 : index
    %c0_10 = arith.constant 0 : index
    %10 = vector.load %arg6[%c0_9, %c0_10] : memref<4x32xf32, #tpu.memory_space<vmem>>, vector<4x32xf32>
    %11 = arith.truncf %10 : vector<4x32xf32> to vector<4x32xbf16>
    %c0_11 = arith.constant 0 : index
    %c0_12 = arith.constant 0 : index
    %12 = vector.load %arg7[%c0_11, %c0_12] : memref<8x16xf32, #tpu.memory_space<vmem>>, vector<8x16xf32>
    %cst = arith.constant dense<0.000000e+00> : vector<16x16xf32>
    %13 = tpu.matmul %3, %7, %cst {dimension_numbers = #tpu.dot_dimension_numbers<[1], [0], [0], [1], [0, 0, 1, 1], [], []>} : vector<16x32xbf16>, vector<32x16xbf16>, vector<16x16xf32> -> vector<16x16xf32>
    %14 = arith.truncf %13 : vector<16x16xf32> to vector<16x16xbf16>
    %cst_13 = arith.constant dense<0.000000e+00> : vector<8x4xf32>
    %15 = tpu.matmul %1, %9, %cst_13 {dimension_numbers = #tpu.dot_dimension_numbers<[1], [0], [0], [1], [0, 0, 1, 1], [], []>} : vector<8x32xbf16>, vector<32x4xbf16>, vector<8x4xf32> -> vector<8x4xf32>
    %cst_14 = arith.constant dense<0.000000e+00> : vector<4x16xf32>
    %16 = tpu.matmul %11, %5, %cst_14 {dimension_numbers = #tpu.dot_dimension_numbers<[1], [0], [0], [1], [0, 0, 1, 1], [], []>} : vector<4x32xbf16>, vector<32x16xbf16>, vector<4x16xf32> -> vector<4x16xf32>
    %17 = vector.extract_strided_slice %15 {offsets = [0, 0], sizes = [8, 1], strides = [1, 1]} : vector<8x4xf32> to vector<8x1xf32>
    %18 = vector.extract_strided_slice %16 {offsets = [0, 0], sizes = [1, 16], strides = [1, 1]} : vector<4x16xf32> to vector<1x16xf32>
    %19 = vector.broadcast %17 : vector<8x1xf32> to vector<8x16xf32>
    %20 = vector.broadcast %18 : vector<1x16xf32> to vector<8x16xf32>
    %21 = arith.addf %19, %20 : vector<8x16xf32>
    %cst_15 = arith.constant 0.000000e+00 : f32
    %22 = vector.broadcast %cst_15 : f32 to vector<8x16xf32>
    %23 = arith.cmpf ogt, %21, %22 : vector<8x16xf32>
    %cst_16 = arith.constant 2.000000e-01 : f32
    %24 = vector.broadcast %cst_16 : f32 to vector<8x16xf32>
    %25 = arith.mulf %24, %21 : vector<8x16xf32>
    %26 = arith.select %23, %21, %25 : vector<8x16xi1>, vector<8x16xf32>
    %27 = arith.addf %26, %12 : vector<8x16xf32>
    %cst_17 = arith.constant dense<0xFF800000> : vector<8xf32>
    %28 = vector.multi_reduction <maximumf>, %27, %cst_17 [1] : vector<8x16xf32> to vector<8xf32>
    %29 = vector.shape_cast %28 : vector<8xf32> to vector<8x1xf32>
    %30 = vector.broadcast %29 : vector<8x1xf32> to vector<8x16xf32>
    %31 = arith.subf %27, %30 : vector<8x16xf32>
    %32 = math.exp %31 : vector<8x16xf32>
    %cst_18 = arith.constant dense<0.000000e+00> : vector<8xf32>
    %33 = vector.multi_reduction <add>, %32, %cst_18 [1] : vector<8x16xf32> to vector<8xf32>
    %34 = vector.shape_cast %33 : vector<8xf32> to vector<8x1xf32>
    %35 = tpu.reciprocal %34 {approx = true} : vector<8x1xf32> -> vector<8x1xf32>
    %36 = vector.broadcast %35 : vector<8x1xf32> to vector<8x16xf32>
    %37 = arith.mulf %32, %36 : vector<8x16xf32>
    %38 = vector.extract_strided_slice %14 {offsets = [0, 0], sizes = [16, 4], strides = [1, 1]} : vector<16x16xbf16> to vector<16x4xbf16>
    %39 = arith.truncf %37 : vector<8x16xf32> to vector<8x16xbf16>
    %cst_19 = arith.constant dense<0.000000e+00> : vector<8x4xf32>
    %40 = tpu.matmul %39, %38, %cst_19 {dimension_numbers = #tpu.dot_dimension_numbers<[1], [0], [0], [1], [0, 0, 1, 1], [], []>} : vector<8x16xbf16>, vector<16x4xbf16>, vector<8x4xf32> -> vector<8x4xf32>
    %41 = vector.extract_strided_slice %15 {offsets = [0, 1], sizes = [8, 1], strides = [1, 1]} : vector<8x4xf32> to vector<8x1xf32>
    %42 = vector.extract_strided_slice %16 {offsets = [1, 0], sizes = [1, 16], strides = [1, 1]} : vector<4x16xf32> to vector<1x16xf32>
    %43 = vector.broadcast %41 : vector<8x1xf32> to vector<8x16xf32>
    %44 = vector.broadcast %42 : vector<1x16xf32> to vector<8x16xf32>
    %45 = arith.addf %43, %44 : vector<8x16xf32>
    %cst_20 = arith.constant 0.000000e+00 : f32
    %46 = vector.broadcast %cst_20 : f32 to vector<8x16xf32>
    %47 = arith.cmpf ogt, %45, %46 : vector<8x16xf32>
    %cst_21 = arith.constant 2.000000e-01 : f32
    %48 = vector.broadcast %cst_21 : f32 to vector<8x16xf32>
    %49 = arith.mulf %48, %45 : vector<8x16xf32>
    %50 = arith.select %47, %45, %49 : vector<8x16xi1>, vector<8x16xf32>
    %51 = arith.addf %50, %12 : vector<8x16xf32>
    %cst_22 = arith.constant dense<0xFF800000> : vector<8xf32>
    %52 = vector.multi_reduction <maximumf>, %51, %cst_22 [1] : vector<8x16xf32> to vector<8xf32>
    %53 = vector.shape_cast %52 : vector<8xf32> to vector<8x1xf32>
    %54 = vector.broadcast %53 : vector<8x1xf32> to vector<8x16xf32>
    %55 = arith.subf %51, %54 : vector<8x16xf32>
    %56 = math.exp %55 : vector<8x16xf32>
    %cst_23 = arith.constant dense<0.000000e+00> : vector<8xf32>
    %57 = vector.multi_reduction <add>, %56, %cst_23 [1] : vector<8x16xf32> to vector<8xf32>
    %58 = vector.shape_cast %57 : vector<8xf32> to vector<8x1xf32>
    %59 = tpu.reciprocal %58 {approx = true} : vector<8x1xf32> -> vector<8x1xf32>
    %60 = vector.broadcast %59 : vector<8x1xf32> to vector<8x16xf32>
    %61 = arith.mulf %56, %60 : vector<8x16xf32>
    %62 = vector.extract_strided_slice %14 {offsets = [0, 4], sizes = [16, 4], strides = [1, 1]} : vector<16x16xbf16> to vector<16x4xbf16>
    %63 = arith.truncf %61 : vector<8x16xf32> to vector<8x16xbf16>
    %cst_24 = arith.constant dense<0.000000e+00> : vector<8x4xf32>
    %64 = tpu.matmul %63, %62, %cst_24 {dimension_numbers = #tpu.dot_dimension_numbers<[1], [0], [0], [1], [0, 0, 1, 1], [], []>} : vector<8x16xbf16>, vector<16x4xbf16>, vector<8x4xf32> -> vector<8x4xf32>
    %65 = vector.extract_strided_slice %15 {offsets = [0, 2], sizes = [8, 1], strides = [1, 1]} : vector<8x4xf32> to vector<8x1xf32>
    %66 = vector.extract_strided_slice %16 {offsets = [2, 0], sizes = [1, 16], strides = [1, 1]} : vector<4x16xf32> to vector<1x16xf32>
    %67 = vector.broadcast %65 : vector<8x1xf32> to vector<8x16xf32>
    %68 = vector.broadcast %66 : vector<1x16xf32> to vector<8x16xf32>
    %69 = arith.addf %67, %68 : vector<8x16xf32>
    %cst_25 = arith.constant 0.000000e+00 : f32
    %70 = vector.broadcast %cst_25 : f32 to vector<8x16xf32>
    %71 = arith.cmpf ogt, %69, %70 : vector<8x16xf32>
    %cst_26 = arith.constant 2.000000e-01 : f32
    %72 = vector.broadcast %cst_26 : f32 to vector<8x16xf32>
    %73 = arith.mulf %72, %69 : vector<8x16xf32>
    %74 = arith.select %71, %69, %73 : vector<8x16xi1>, vector<8x16xf32>
    %75 = arith.addf %74, %12 : vector<8x16xf32>
    %cst_27 = arith.constant dense<0xFF800000> : vector<8xf32>
    %76 = vector.multi_reduction <maximumf>, %75, %cst_27 [1] : vector<8x16xf32> to vector<8xf32>
    %77 = vector.shape_cast %76 : vector<8xf32> to vector<8x1xf32>
    %78 = vector.broadcast %77 : vector<8x1xf32> to vector<8x16xf32>
    %79 = arith.subf %75, %78 : vector<8x16xf32>
    %80 = math.exp %79 : vector<8x16xf32>
    %cst_28 = arith.constant dense<0.000000e+00> : vector<8xf32>
    %81 = vector.multi_reduction <add>, %80, %cst_28 [1] : vector<8x16xf32> to vector<8xf32>
    %82 = vector.shape_cast %81 : vector<8xf32> to vector<8x1xf32>
    %83 = tpu.reciprocal %82 {approx = true} : vector<8x1xf32> -> vector<8x1xf32>
    %84 = vector.broadcast %83 : vector<8x1xf32> to vector<8x16xf32>
    %85 = arith.mulf %80, %84 : vector<8x16xf32>
    %86 = vector.extract_strided_slice %14 {offsets = [0, 8], sizes = [16, 4], strides = [1, 1]} : vector<16x16xbf16> to vector<16x4xbf16>
    %87 = arith.truncf %85 : vector<8x16xf32> to vector<8x16xbf16>
    %cst_29 = arith.constant dense<0.000000e+00> : vector<8x4xf32>
    %88 = tpu.matmul %87, %86, %cst_29 {dimension_numbers = #tpu.dot_dimension_numbers<[1], [0], [0], [1], [0, 0, 1, 1], [], []>} : vector<8x16xbf16>, vector<16x4xbf16>, vector<8x4xf32> -> vector<8x4xf32>
    %89 = vector.extract_strided_slice %15 {offsets = [0, 3], sizes = [8, 1], strides = [1, 1]} : vector<8x4xf32> to vector<8x1xf32>
    %90 = vector.extract_strided_slice %16 {offsets = [3, 0], sizes = [1, 16], strides = [1, 1]} : vector<4x16xf32> to vector<1x16xf32>
    %91 = vector.broadcast %89 : vector<8x1xf32> to vector<8x16xf32>
    %92 = vector.broadcast %90 : vector<1x16xf32> to vector<8x16xf32>
    %93 = arith.addf %91, %92 : vector<8x16xf32>
    %cst_30 = arith.constant 0.000000e+00 : f32
    %94 = vector.broadcast %cst_30 : f32 to vector<8x16xf32>
    %95 = arith.cmpf ogt, %93, %94 : vector<8x16xf32>
    %cst_31 = arith.constant 2.000000e-01 : f32
    %96 = vector.broadcast %cst_31 : f32 to vector<8x16xf32>
    %97 = arith.mulf %96, %93 : vector<8x16xf32>
    %98 = arith.select %95, %93, %97 : vector<8x16xi1>, vector<8x16xf32>
    %99 = arith.addf %98, %12 : vector<8x16xf32>
    %cst_32 = arith.constant dense<0xFF800000> : vector<8xf32>
    %100 = vector.multi_reduction <maximumf>, %99, %cst_32 [1] : vector<8x16xf32> to vector<8xf32>
    %101 = vector.shape_cast %100 : vector<8xf32> to vector<8x1xf32>
    %102 = vector.broadcast %101 : vector<8x1xf32> to vector<8x16xf32>
    %103 = arith.subf %99, %102 : vector<8x16xf32>
    %104 = math.exp %103 : vector<8x16xf32>
    %cst_33 = arith.constant dense<0.000000e+00> : vector<8xf32>
    %105 = vector.multi_reduction <add>, %104, %cst_33 [1] : vector<8x16xf32> to vector<8xf32>
    %106 = vector.shape_cast %105 : vector<8xf32> to vector<8x1xf32>
    %107 = tpu.reciprocal %106 {approx = true} : vector<8x1xf32> -> vector<8x1xf32>
    %108 = vector.broadcast %107 : vector<8x1xf32> to vector<8x16xf32>
    %109 = arith.mulf %104, %108 : vector<8x16xf32>
    %110 = vector.extract_strided_slice %14 {offsets = [0, 12], sizes = [16, 4], strides = [1, 1]} : vector<16x16xbf16> to vector<16x4xbf16>
    %111 = arith.truncf %109 : vector<8x16xf32> to vector<8x16xbf16>
    %cst_34 = arith.constant dense<0.000000e+00> : vector<8x4xf32>
    %112 = tpu.matmul %111, %110, %cst_34 {dimension_numbers = #tpu.dot_dimension_numbers<[1], [0], [0], [1], [0, 0, 1, 1], [], []>} : vector<8x16xbf16>, vector<16x4xbf16>, vector<8x4xf32> -> vector<8x4xf32>
    %cst_35 = arith.constant 0.000000e+00 : f32
    %113 = vector.broadcast %cst_35 : f32 to vector<8x4xf32>
    %114 = arith.addf %113, %40 : vector<8x4xf32>
    %115 = arith.addf %114, %64 : vector<8x4xf32>
    %116 = arith.addf %115, %88 : vector<8x4xf32>
    %117 = arith.addf %116, %112 : vector<8x4xf32>
    %cst_36 = arith.constant 2.500000e-01 : f32
    %118 = vector.broadcast %cst_36 : f32 to vector<8x4xf32>
    %119 = arith.mulf %117, %118 : vector<8x4xf32>
    %c0_37 = arith.constant 0 : index
    %c0_38 = arith.constant 0 : index
    %120 = vector.load %arg8[%c0_37, %c0_38] : memref<8x4xf32, #tpu.memory_space<vmem>>, vector<8x4xf32>
    tpu.vector_store %arg8[%c0_37, %c0_38], %119 {strides = array<i32>} : memref<8x4xf32, #tpu.memory_space<vmem>>, vector<8x4xf32>,
    return
  }
  func.func @transform_0(%arg0: i32) -> (i32, i32) {
    %c0_i32 = arith.constant 0 : i32
    %c0_i32_0 = arith.constant 0 : i32
    return %arg0, %c0_i32 : i32, i32
  }
  func.func @transform_1(%arg0: i32) -> (i32, i32) {
    %c0_i32 = arith.constant 0 : i32
    %c0_i32_0 = arith.constant 0 : i32
    %c0_i32_1 = arith.constant 0 : i32
    return %c0_i32, %c0_i32_0 : i32, i32
  }
  func.func @transform_2(%arg0: i32) -> (i32, i32) {
    %c0_i32 = arith.constant 0 : i32
    %c0_i32_0 = arith.constant 0 : i32
    %c0_i32_1 = arith.constant 0 : i32
    return %c0_i32, %c0_i32_0 : i32, i32
  }
  func.func @transform_3(%arg0: i32) -> (i32, i32) {
    %c0_i32 = arith.constant 0 : i32
    %c0_i32_0 = arith.constant 0 : i32
    %c0_i32_1 = arith.constant 0 : i32
    return %c0_i32, %c0_i32_0 : i32, i32
  }
  func.func @transform_4(%arg0: i32) -> (i32, i32) {
    %c0_i32 = arith.constant 0 : i32
    %c0_i32_0 = arith.constant 0 : i32
    %c0_i32_1 = arith.constant 0 : i32
    return %c0_i32, %c0_i32_0 : i32, i32
  }
  func.func @transform_5(%arg0: i32) -> (i32, i32) {
    %c0_i32 = arith.constant 0 : i32
    %c0_i32_0 = arith.constant 0 : i32
    %c0_i32_1 = arith.constant 0 : i32
    return %c0_i32, %c0_i32_0 : i32, i32
  }
  func.func @transform_6(%arg0: i32) -> (i32, i32) {
    %c0_i32 = arith.constant 0 : i32
    %c0_i32_0 = arith.constant 0 : i32
    return %arg0, %c0_i32 : i32, i32
  }
  func.func @transform_7(%arg0: i32) -> (i32, i32) {
    %c0_i32 = arith.constant 0 : i32
    %c0_i32_0 = arith.constant 0 : i32
    return %arg0, %c0_i32 : i32, i32
  }
}

</mosaic_0001>

<llo_original>
// kernel: gat_forward.5
$region0: #{gat_forward.5}
  #allocation0 [shape = 'u32[]', space=smem, size = 0x4, offset = 0x4, fixed_abs, tag = 'smem constant byte address 0x4 - core index']
  #allocation1 [shape = 'u32[72,128]{1,0:T(1,128)}', space=vmem, size = 0x9000, scoped, tag = 'internal scratch']
  %s0 = inlined_call_operand.vmem [shape: f32[16,32], index: 0, kind: input, shape index: {}, may-alias: {0,1}]
  %s1 = inlined_call_operand.vmem [shape: f32[16,32], index: 1, kind: input, shape index: {}, may-alias: {0,1}]
  %s2 = inlined_call_operand.vmem [shape: f32[32,16], index: 2, kind: input, shape index: {}]
  %s3 = inlined_call_operand.vmem [shape: f32[32,16], index: 3, kind: input, shape index: {}]
  %s4 = inlined_call_operand.vmem [shape: f32[32,4], index: 4, kind: input, shape index: {}]
  %s5 = inlined_call_operand.vmem [shape: f32[4,32], index: 5, kind: input, shape index: {}]
  %s6 = inlined_call_operand.vmem [shape: f32[16,16], index: 6, kind: input, shape index: {}]
  %s7 = inlined_call_operand.vmem [shape: f32[16,4], index: 7, kind: output, shape index: {}]
  %s8 = sld [smem:[#allocation0]]
  $region61: #{gat_forward.5} parent=0
    _
  %s10 = ssub.s32 1, %s8
  %s11 = scalar_select 0, %s10, %s8
  loop: start=0, step=1, limit=4
  $region2: #{gat_forward.5} parent=0 // loop_pre_header
    _
  $region3: #{gat_forward.5} parent=0 // loop_header
    %s13 = sphi 0, %s17
    %p14 = scmp.ge.s32.totalorder %s13, 4
    %s23 = sphi 0, %s25
    %s26 = sphi 0, %s23
    %s27 = sphi 0, %s26
    %s43 = sphi 0, %s27
    %s47 = sphi 0, %s47
    %s49 = sphi 0, %s47
    %s50 = sphi 0, %s49
    %s64 = sphi 0, %s50
    %s68 = sphi 0, %s68
    %s70 = sphi 0, %s68
    %s71 = sphi 0, %s70
    %s85 = sphi 0, %s71
    %s89 = sphi 0, %s89
    %s91 = sphi 0, %s89
    %s92 = sphi 0, %s91
    %s106 = sphi 0, %s92
    %s110 = sphi 0, %s110
    %s112 = sphi 0, %s110
    %s113 = sphi 0, %s112
    %s127 = sphi 0, %s113
    %s131 = sphi 0, %s131
    %s133 = sphi 0, %s131
    %s134 = sphi 0, %s133
    %s148 = sphi 0, %s134
    %s154 = sphi 0, %s156
    %s157 = sphi 0, %s154
    %s158 = sphi 0, %s157
    %s174 = sphi 0, %s158
    %s180 = sphi 0, %s182
    %s183 = sphi 0, %s180
    %s184 = sphi 0, %s183
    %s200 = sphi 0, %s184
  $region4: #{gat_forward.5} parent=0 // loop_header_branch
    %16 = sbr.rel (%p14) target = $region8
  $region5: #{gat_forward.5} parent=0 // loop_body
    %s18 = ssub.s32 %s13, 1
    %s19 = ssub.s32 %s13, 2
    %s20 = sadd.s32 %s13, 1
    %s21 = ssub.s32 %s13, %s20
    %p22 = scmp.eq.s32.totalorder %s21, 0
    %s24 = sadd.s32 %s23, 1
    %s25 = scalar_select %p22, %s23, %s24
    %p28 = pneg %p22
    %p29 = scmp.eq.s32.totalorder %s13, 1
    %p30 = por %p28, %p29
    %p31 = scmp.ne.s32.totalorder %s23, %s26
    %p32 = scmp.eq.s32.totalorder %s13, 0
    %p33 = por %p31, %p32
    %p34 = scmp.ne.s32.totalorder %s23, %s26
    %p35 = scmp.eq.s32.totalorder %s18, 1
    %p36 = por %p34, %p35
    %p37 = scmp.ne.s32.totalorder %s26, %s27
    %p38 = scmp.eq.s32.totalorder %s18, 0
    %p39 = por %p37, %p38
    %p40 = scmp.ne.s32.totalorder %s26, %s27
    %p41 = scmp.eq.s32.totalorder %s19, 1
    %p42 = por %p40, %p41
    %p44 = scmp.ne.s32.totalorder %s27, %s43
    %p45 = scmp.eq.s32.totalorder %s19, 0
    %p46 = por %p44, %p45
    %s48 = sadd.s32 %s47, 1
    %p51 = scmp.eq.s32.totalorder %s13, 1
    %p52 = scmp.ne.s32.totalorder %s47, %s49
    %p53 = scmp.eq.s32.totalorder %s13, 0
    %p54 = por %p52, %p53
    %p55 = scmp.ne.s32.totalorder %s47, %s49
    %p56 = scmp.eq.s32.totalorder %s18, 1
    %p57 = por %p55, %p56
    %p58 = scmp.ne.s32.totalorder %s49, %s50
    %p59 = scmp.eq.s32.totalorder %s18, 0
    %p60 = por %p58, %p59
    %p61 = scmp.ne.s32.totalorder %s49, %s50
    %p62 = scmp.eq.s32.totalorder %s19, 1
    %p63 = por %p61, %p62
    %p65 = scmp.ne.s32.totalorder %s50, %s64
    %p66 = scmp.eq.s32.totalorder %s19, 0
    %p67 = por %p65, %p66
    %s69 = sadd.s32 %s68, 1
    %p72 = scmp.eq.s32.totalorder %s13, 1
    %p73 = scmp.ne.s32.totalorder %s68, %s70
    %p74 = scmp.eq.s32.totalorder %s13, 0
    %p75 = por %p73, %p74
    %p76 = scmp.ne.s32.totalorder %s68, %s70
    %p77 = scmp.eq.s32.totalorder %s18, 1
    %p78 = por %p76, %p77
    %p79 = scmp.ne.s32.totalorder %s70, %s71
    %p80 = scmp.eq.s32.totalorder %s18, 0
    %p81 = por %p79, %p80
    %p82 = scmp.ne.s32.totalorder %s70, %s71
    %p83 = scmp.eq.s32.totalorder %s19, 1
    %p84 = por %p82, %p83
    %p86 = scmp.ne.s32.totalorder %s71, %s85
    %p87 = scmp.eq.s32.totalorder %s19, 0
    %p88 = por %p86, %p87
    %s90 = sadd.s32 %s89, 1
    %p93 = scmp.eq.s32.totalorder %s13, 1
    %p94 = scmp.ne.s32.totalorder %s89, %s91
    %p95 = scmp.eq.s32.totalorder %s13, 0
    %p96 = por %p94, %p95
    %p97 = scmp.ne.s32.totalorder %s89, %s91
    %p98 = scmp.eq.s32.totalorder %s18, 1
    %p99 = por %p97, %p98
    %p100 = scmp.ne.s32.totalorder %s91, %s92
    %p101 = scmp.eq.s32.totalorder %s18, 0
    %p102 = por %p100, %p101
    %p103 = scmp.ne.s32.totalorder %s91, %s92
    %p104 = scmp.eq.s32.totalorder %s19, 1
    %p105 = por %p103, %p104
    %p107 = scmp.ne.s32.totalorder %s92, %s106
    %p108 = scmp.eq.s32.totalorder %s19, 0
    %p109 = por %p107, %p108
    %s111 = sadd.s32 %s110, 1
    %p114 = scmp.eq.s32.totalorder %s13, 1
    %p115 = scmp.ne.s32.totalorder %s110, %s112
    %p116 = scmp.eq.s32.totalorder %s13, 0
    %p117 = por %p115, %p116
    %p118 = scmp.ne.s32.totalorder %s110, %s112
    %p119 = scmp.eq.s32.totalorder %s18, 1
    %p120 = por %p118, %p119
    %p121 = scmp.ne.s32.totalorder %s112, %s113
    %p122 = scmp.eq.s32.totalorder %s18, 0
    %p123 = por %p121, %p122
    %p124 = scmp.ne.s32.totalorder %s112, %s113
    %p125 = scmp.eq.s32.totalorder %s19, 1
    %p126 = por %p124, %p125
    %p128 = scmp.ne.s32.totalorder %s113, %s127
    %p129 = scmp.eq.s32.totalorder %s19, 0
    %p130 = por %p128, %p129
    %s132 = sadd.s32 %s131, 1
    %p135 = scmp.eq.s32.totalorder %s13, 1
    %p136 = scmp.ne.s32.totalorder %s131, %s133
    %p137 = scmp.eq.s32.totalorder %s13, 0
    %p138 = por %p136, %p137
    %p139 = scmp.ne.s32.totalorder %s131, %s133
    %p140 = scmp.eq.s32.totalorder %s18, 1
    %p141 = por %p139, %p140
    %p142 = scmp.ne.s32.totalorder %s133, %s134
    %p143 = scmp.eq.s32.totalorder %s18, 0
    %p144 = por %p142, %p143
    %p145 = scmp.ne.s32.totalorder %s133, %s134
    %p146 = scmp.eq.s32.totalorder %s19, 1
    %p147 = por %p145, %p146
    %p149 = scmp.ne.s32.totalorder %s134, %s148
    %p150 = scmp.eq.s32.totalorder %s19, 0
    %p151 = por %p149, %p150
    %s152 = ssub.s32 %s13, %s20
    %p153 = scmp.eq.s32.totalorder %s152, 0
    %s155 = sadd.s32 %s154, 1
    %s156 = scalar_select %p153, %s154, %s155
    %p159 = pneg %p153
    %p160 = scmp.eq.s32.totalorder %s13, 1
    %p161 = por %p159, %p160
    %p162 = scmp.ne.s32.totalorder %s154, %s157
    %p163 = scmp.eq.s32.totalorder %s13, 0
    %p164 = por %p162, %p163
    %p165 = scmp.ne.s32.totalorder %s154, %s157
    %p166 = scmp.eq.s32.totalorder %s18, 1
    %p167 = por %p165, %p166
    %p168 = scmp.ne.s32.totalorder %s157, %s158
    %p169 = scmp.eq.s32.totalorder %s18, 0
    %p170 = por %p168, %p169
    %p171 = scmp.ne.s32.totalorder %s157, %s158
    %p172 = scmp.eq.s32.totalorder %s19, 1
    %p173 = por %p171, %p172
    %p175 = scmp.ne.s32.totalorder %s158, %s174
    %p176 = scmp.eq.s32.totalorder %s19, 0
    %p177 = por %p175, %p176
    %s178 = ssub.s32 %s13, %s20
    %p179 = scmp.eq.s32.totalorder %s178, 0
    %s181 = sadd.s32 %s180, 1
    %s182 = scalar_select %p179, %s180, %s181
    %p185 = pneg %p179
    %p186 = scmp.eq.s32.totalorder %s13, 1
    %p187 = por %p185, %p186
    %p188 = scmp.ne.s32.totalorder %s180, %s183
    %p189 = scmp.eq.s32.totalorder %s13, 0
    %p190 = por %p188, %p189
    %p191 = scmp.ne.s32.totalorder %s180, %s183
    %p192 = scmp.eq.s32.totalorder %s18, 1
    %p193 = por %p191, %p192
    %p194 = scmp.ne.s32.totalorder %s183, %s184
    %p195 = scmp.eq.s32.totalorder %s18, 0
    %p196 = por %p194, %p195
    %p197 = scmp.ne.s32.totalorder %s183, %s184
    %p198 = scmp.eq.s32.totalorder %s19, 1
    %p199 = por %p197, %p198
    %p201 = scmp.ne.s32.totalorder %s184, %s200
    %p202 = scmp.eq.s32.totalorder %s19, 0
    %p203 = por %p201, %p202
    %p204 = scmp.le.s32.totalorder 1, %s13
    %p205 = scmp.lt.s32.totalorder %s13, 3
    %p206 = pnand %p204, %p205
    %p207 = pneg %p206
    // Predicated region
    $region9: #{gat_forward.5} parent=5 // pred_check
      _
    $region10: #{gat_forward.5} parent=5 // pred_check_branch
      %209 = sbr.rel (%p206) target = $region12
    $region11: #{gat_forward.5} parent=5 // pred_region
      %s210 = ssub.s32 %s13, 1
      // Predicated region
      $region13: #{gat_forward.5} parent=11 // pred_check
        %p211 = pneg %p60
      $region14: #{gat_forward.5} parent=11 // pred_check_branch
        %213 = sbr.rel (%p211) target = $region16
      $region15: #{gat_forward.5} parent=11 // pred_region
        _
      $region16: #{gat_forward.5} parent=11 // pred_fallthru
        _
      // Predicated region
      $region17: #{gat_forward.5} parent=11 // pred_check
        %p214 = pneg %p81
      $region18: #{gat_forward.5} parent=11 // pred_check_branch
        %216 = sbr.rel (%p214) target = $region20
      $region19: #{gat_forward.5} parent=11 // pred_region
        _
      $region20: #{gat_forward.5} parent=11 // pred_fallthru
        _
      // Predicated region
      $region21: #{gat_forward.5} parent=11 // pred_check
        %p217 = pneg %p102
      $region22: #{gat_forward.5} parent=11 // pred_check_branch
        %219 = sbr.rel (%p217) target = $region24
      $region23: #{gat_forward.5} parent=11 // pred_region
        _
      $region24: #{gat_forward.5} parent=11 // pred_fallthru
        _
      // Predicated region
      $region25: #{gat_forward.5} parent=11 // pred_check
        %p220 = pneg %p123
      $region26: #{gat_forward.5} parent=11 // pred_check_branch
        %222 = sbr.rel (%p220) target = $region28
      $region27: #{gat_forward.5} parent=11 // pred_region
        _
      $region28: #{gat_forward.5} parent=11 // pred_fallthru
        _
      // Predicated region
      $region29: #{gat_forward.5} parent=11 // pred_check
        %p223 = pneg %p144
      $region30: #{gat_forward.5} parent=11 // pred_check_branch
        %225 = sbr.rel (%p223) target = $region32
      $region31: #{gat_forward.5} parent=11 // pred_region
        _
      $region32: #{gat_forward.5} parent=11 // pred_fallthru
        _
    $region12: #{gat_forward.5} parent=5 // pred_fallthru
      _
    %p226 = scmp.lt.s32.totalorder %s13, 2
    // Predicated region
    $region33: #{gat_forward.5} parent=5 // pred_check
      %p227 = pneg %p226
    $region34: #{gat_forward.5} parent=5 // pred_check_branch
      %229 = sbr.rel (%p227) target = $region36
    $region35: #{gat_forward.5} parent=5 // pred_region
      // Predicated region
      $region37: #{gat_forward.5} parent=35 // pred_check
        %p230 = pneg %p33
      $region38: #{gat_forward.5} parent=35 // pred_check_branch
        %232 = sbr.rel (%p230) target = $region40
      $region39: #{gat_forward.5} parent=35 // pred_region
        %p233 = scmp.lt.s32.totalorder %s13, 1
        %s234 = scalar_select %p233, %s13, 1
        %s235 = smul.addr %s234, 8
        %s236 = scalar_lea.vmem %s0, %s235
      $region40: #{gat_forward.5} parent=35 // pred_fallthru
        _
      // Predicated region
      $region41: #{gat_forward.5} parent=35 // pred_check
        %p237 = pneg %p164
      $region42: #{gat_forward.5} parent=35 // pred_check_branch
        %239 = sbr.rel (%p237) target = $region44
      $region43: #{gat_forward.5} parent=35 // pred_region
        %p240 = scmp.lt.s32.totalorder %s13, 1
        %s241 = scalar_select %p240, %s13, 1
        %s242 = smul.addr %s241, 8
        %s243 = scalar_lea.vmem %s6, %s242
      $region44: #{gat_forward.5} parent=35 // pred_fallthru
        _
    $region36: #{gat_forward.5} parent=5 // pred_fallthru
      _
    %p244 = scmp.le.s32.totalorder 1, %s13
    %p245 = scmp.lt.s32.totalorder %s13, 3
    %p246 = pnand %p244, %p245
    %p247 = pneg %p246
    // Predicated region
    $region45: #{gat_forward.5} parent=5 // pred_check
      _
    $region46: #{gat_forward.5} parent=5 // pred_check_branch
      %249 = sbr.rel (%p246) target = $region48
    $region47: #{gat_forward.5} parent=5 // pred_region
      %s250 = ssub.s32 %s13, 1
      %p251 = scmp.lt.s32.totalorder %s18, 1
      %s252 = scalar_select %p251, %s18, 1
      %s253 = smul.addr %s252, 8
      %s254 = scalar_lea.vmem %s0, %s253
      %p255 = pneg %p39
      %p256 = pneg %p36
      %p257 = pneg %p60
      %p258 = pneg %p57
      %p259 = pneg %p81
      %p260 = pneg %p78
      %p261 = pneg %p102
      %p262 = pneg %p99
      %p263 = pneg %p123
      %p264 = pneg %p120
      %p265 = pneg %p144
      %p266 = pneg %p141
      %p267 = scmp.lt.s32.totalorder %s18, 1
      %s268 = scalar_select %p267, %s18, 1
      %s269 = smul.addr %s268, 8
      %s270 = scalar_lea.vmem %s6, %s269
      %p271 = pneg %p170
      %p272 = pneg %p167
      %p273 = pneg %p196
      %p274 = pneg %p193
      %p275 = scmp.lt.s32.totalorder %s18, 1
      %s276 = scalar_select %p275, %s18, 1
      %s277 = smul.addr %s276, 8
      %s278 = scalar_lea.vmem %s7, %s277
      %p279 = scmp.lt.s32.totalorder %s18, 1
      %s280 = scalar_select %p279, %s18, 1
      %s281 = smul.addr %s280, 8
      %s282 = scalar_lea.vmem %s0, %s281
      %p283 = scmp.lt.s32.totalorder %s18, 1
      %s284 = scalar_select %p283, %s18, 1
      %s285 = smul.addr %s284, 8
      %s286 = scalar_lea.vmem %s6, %s285
      %p287 = scmp.lt.s32.totalorder %s18, 1
      %s288 = scalar_select %p287, %s18, 1
      %s289 = smul.addr %s288, 8
      %s290 = scalar_lea.vmem %s7, %s289
      %v292 = vld [vmem:[%s282] sm:$0xff]
      %v293 = vpack.c.bf16 %v292, %v292
      %v294 = vld [vmem:[%s1] sm:$0xff]
      %v295 = vld [vmem:[%s1 + $0x8] sm:$0xff]
      %v296 = vpack.c.bf16 %v295, %v294
      %v297 = vld [vmem:[%s2] sm:$0xff]
      %v298 = vld [vmem:[%s2 + $0x8] sm:$0xff]
      %v299 = vld [vmem:[%s2 + $0x10] sm:$0xff]
      %v300 = vld [vmem:[%s2 + $0x18] sm:$0xff]
      %v301 = vpack.c.bf16 %v298, %v297
      %v302 = vpack.c.bf16 %v300, %v299
      %v303 = vld [vmem:[%s3] sm:$0xff]
      %v304 = vld [vmem:[%s3 + $0x8] sm:$0xff]
      %v305 = vld [vmem:[%s3 + $0x10] sm:$0xff]
      %v306 = vld [vmem:[%s3 + $0x18] sm:$0xff]
      %v307 = vpack.c.bf16 %v304, %v303
      %v308 = vpack.c.bf16 %v306, %v305
      %v309 = vld [vmem:[%s4] sm:$0xff]
      %v310 = vld [vmem:[%s4 + $0x8] sm:$0xff]
      %v311 = vld [vmem:[%s4 + $0x10] sm:$0xff]
      %v312 = vld [vmem:[%s4 + $0x18] sm:$0xff]
      %v313 = vpack.c.bf16 %v310, %v309
      %v314 = vpack.c.bf16 %v312, %v311
      %v315 = vld [vmem:[%s5] sm:$0xf]
      %v316 = vpack.c.bf16 %v315, %v315
      %v317 = vld [vmem:[%s286] sm:$0xff]
      %vm318 = vcmask 261120
      %v320 = vsel %vm318, %v296, 0
      %322 = vmatpush.bf16.msra.mxu0 0
      %323 = vmatpush.bf16.msra.mxu0 0
      %324 = vmatpush.bf16.msra.mxu0 0
      %325 = vmatpush.bf16.msra.mxu0 0
      %326 = vmatpush.bf16.msra.mxu0 0
      %327 = vmatpush.bf16.msra.mxu0 0
      %328 = vmatpush.bf16.msra.mxu0 %v308
      %329 = vmatpush.bf16.msra.mxu0 %v307
      %330 = vmatmul.bf16.gmra.mxu0 %v320
      %v331 = vpop.f32.mrf.mxu0
      %v332 = vadd.f32 0.0, %v331
      %v333 = vpop.f32.mrf.mxu0
      %v334 = vadd.f32 0.0, %v333
      %335 = vdwg.mxu0
      %v336 = vpack.c.bf16 %v332, %v332
      %v337 = vpack.c.bf16 %v334, %v334
      %v339 = vsel %vm318, %v293, 0
      %341 = vmatpush.bf16.msra.mxu0 0
      %342 = vmatpush.bf16.msra.mxu0 0
      %343 = vmatpush.bf16.msra.mxu0 0
      %344 = vmatpush.bf16.msra.mxu0 0
      %345 = vmatpush.bf16.msra.mxu0 0
      %346 = vmatpush.bf16.msra.mxu0 0
      %347 = vmatpush.bf16.msra.mxu0 %v314
      %348 = vmatpush.bf16.msra.mxu0 %v313
      %349 = vmatmul.bf16.gmra.mxu0 %v339
      %v350 = vpop.f32.mrf.mxu0
      %v351 = vadd.f32 0.0, %v350
      %v352 = vpop.f32.mrf.mxu0
      %353 = vdwg.mxu0
      %v355 = vsel %vm318, %v316, 0
      %357 = vmatpush.bf16.msra.mxu0 0
      %358 = vmatpush.bf16.msra.mxu0 0
      %359 = vmatpush.bf16.msra.mxu0 0
      %360 = vmatpush.bf16.msra.mxu0 0
      %361 = vmatpush.bf16.msra.mxu0 0
      %362 = vmatpush.bf16.msra.mxu0 0
      %363 = vmatpush.bf16.msra.mxu0 %v302
      %364 = vmatpush.bf16.msra.mxu0 %v301
      %365 = vmatmul.bf16.gmra.mxu0 %v355
      %v366 = vpop.f32.mrf.mxu0
      %v367 = vadd.f32 0.0, %v366
      %v368 = vpop.f32.mrf.mxu0
      %369 = vdwg.mxu0
      %371 = vset.pattern.permute.xlu0 0
      %372 = vperm.xlu0 %371, %v351
      %v373 = vpop.permute.xlu0 %372
      %v375 = vperm.slane %v367, 0
      %v376 = vadd.f32 %v373, %v375
      %vm377 = vcmp.gt.f32.partialorder %v376, 0.0
      %v378 = vmul.f32 %v376, 0.2
      %v379 = vsel %vm377, %v376, %v378
      %v380 = vadd.f32 %v379, %v317
      %vm381 = vcmask 130048
      %v382 = vsel %vm381, %v380, -inf
      %383 = vmax.xlane.f32.xlu0 %v382
      %v384 = vpop.xlane.xlu0 %383
      %v385 = vsub.f32 %v380, %v384
      %v386 = vmul.f32 %v385, 1.442695
      %v387 = vpow.pop %v386
      %v388 = vsel %vm381, %v387, 0.0
      %389 = vadd.xlane.f32.xlu0 %v388
      %v390 = vpop.xlane.xlu0 %389
      %v391 = vrcp.pop %v390
      %v392 = vmul.f32 %v387, %v391
      %v393 = vpack.c.bf16 %v392, %v392
      %394 = vset.pattern.permute.xlu0 1
      %395 = vperm.xlu0 %394, %v351
      %v396 = vpop.permute.xlu0 %395
      %v398 = vperm.slane %v367, 1
      %v399 = vadd.f32 %v396, %v398
      %vm400 = vcmp.gt.f32.partialorder %v399, 0.0
      %v401 = vmul.f32 %v399, 0.2
      %v402 = vsel %vm400, %v399, %v401
      %v403 = vadd.f32 %v402, %v317
      %v404 = vsel %vm381, %v403, -inf
      %405 = vmax.xlane.f32.xlu0 %v404
      %v406 = vpop.xlane.xlu0 %405
      %v407 = vsub.f32 %v403, %v406
      %v408 = vmul.f32 %v407, 1.442695
      %v409 = vpow.pop %v408
      %v410 = vsel %vm381, %v409, 0.0
      %411 = vadd.xlane.f32.xlu0 %v410
      %v412 = vpop.xlane.xlu0 %411
      %v413 = vrcp.pop %v412
      %v414 = vmul.f32 %v409, %v413
      %v415 = vpack.c.bf16 %v414, %v414
      %v418 = vunpack.c.l.b16 %v336
      %v419 = vunpack.c.l.b16 %v337
      %v420 = vpack.c.b16 %v419, %v418
      %421 = vrot.lane.b32.xlu0 %v420, 124
      %v422 = vpop.permute.xlu0 %421
      %v425 = vsel %vm381, %v415, 0
      %427 = vmatpush.bf16.msra.mxu0 0
      %428 = vmatpush.bf16.msra.mxu0 0
      %429 = vmatpush.bf16.msra.mxu0 0
      %430 = vmatpush.bf16.msra.mxu0 0
      %431 = vmatpush.bf16.msra.mxu0 0
      %432 = vmatpush.bf16.msra.mxu0 0
      %433 = vmatpush.bf16.msra.mxu0 0
      %434 = vmatpush.bf16.msra.mxu0 %v422
      %435 = vmatmul.bf16.gmra.mxu0 %v425
      %v436 = vpop.f32.mrf.mxu0
      %v437 = vadd.f32 0.0, %v436
      %v438 = vpop.f32.mrf.mxu0
      %439 = vdwg.mxu0
      %440 = vset.pattern.permute.xlu0 2
      %441 = vperm.xlu0 %440, %v351
      %v442 = vpop.permute.xlu0 %441
      %v444 = vperm.slane %v367, 2
      %v445 = vadd.f32 %v442, %v444
      %vm446 = vcmp.gt.f32.partialorder %v445, 0.0
      %v447 = vmul.f32 %v445, 0.2
      %v448 = vsel %vm446, %v445, %v447
      %v449 = vadd.f32 %v448, %v317
      %v450 = vsel %vm381, %v449, -inf
      %451 = vmax.xlane.f32.xlu0 %v450
      %v452 = vpop.xlane.xlu0 %451
      %v453 = vsub.f32 %v449, %v452
      %v454 = vmul.f32 %v453, 1.442695
      %v455 = vpow.pop %v454
      %v456 = vsel %vm381, %v455, 0.0
      %457 = vadd.xlane.f32.xlu0 %v456
      %v458 = vpop.xlane.xlu0 %457
      %v459 = vrcp.pop %v458
      %v460 = vmul.f32 %v455, %v459
      %v461 = vpack.c.bf16 %v460, %v460
      %462 = vrot.lane.b32.xlu0 %v420, 120
      %v463 = vpop.permute.xlu0 %462
      %v466 = vsel %vm381, %v461, 0
      %468 = vmatpush.bf16.msra.mxu0 0
      %469 = vmatpush.bf16.msra.mxu0 0
      %470 = vmatpush.bf16.msra.mxu0 0
      %471 = vmatpush.bf16.msra.mxu0 0
      %472 = vmatpush.bf16.msra.mxu0 0
      %473 = vmatpush.bf16.msra.mxu0 0
      %474 = vmatpush.bf16.msra.mxu0 0
      %475 = vmatpush.bf16.msra.mxu0 %v463
      %476 = vmatmul.bf16.gmra.mxu0 %v466
      %v477 = vpop.f32.mrf.mxu0
      %v478 = vadd.f32 0.0, %v477
      %v479 = vpop.f32.mrf.mxu0
      %480 = vdwg.mxu0
      %481 = vset.pattern.permute.xlu0 3
      %482 = vperm.xlu0 %481, %v351
      %v483 = vpop.permute.xlu0 %482
      %v485 = vperm.slane %v367, 3
      %v486 = vadd.f32 %v483, %v485
      %vm487 = vcmp.gt.f32.partialorder %v486, 0.0
      %v488 = vmul.f32 %v486, 0.2
      %v489 = vsel %vm487, %v486, %v488
      %v490 = vadd.f32 %v489, %v317
      %v491 = vsel %vm381, %v490, -inf
      %492 = vmax.xlane.f32.xlu0 %v491
      %v493 = vpop.xlane.xlu0 %492
      %v494 = vsub.f32 %v490, %v493
      %v495 = vmul.f32 %v494, 1.442695
      %v496 = vpow.pop %v495
      %v497 = vsel %vm381, %v496, 0.0
      %498 = vadd.xlane.f32.xlu0 %v497
      %v499 = vpop.xlane.xlu0 %498
      %v500 = vrcp.pop %v499
      %v501 = vmul.f32 %v496, %v500
      %v502 = vpack.c.bf16 %v501, %v501
      %503 = vrot.lane.b32.xlu0 %v420, 116
      %v504 = vpop.permute.xlu0 %503
      %v507 = vsel %vm381, %v502, 0
      %509 = vmatpush.bf16.msra.mxu0 0
      %510 = vmatpush.bf16.msra.mxu0 0
      %511 = vmatpush.bf16.msra.mxu0 0
      %512 = vmatpush.bf16.msra.mxu0 0
      %513 = vmatpush.bf16.msra.mxu0 0
      %514 = vmatpush.bf16.msra.mxu0 0
      %515 = vmatpush.bf16.msra.mxu0 0
      %516 = vmatpush.bf16.msra.mxu0 %v504
      %517 = vmatmul.bf16.gmra.mxu0 %v507
      %v518 = vpop.f32.mrf.mxu0
      %v519 = vadd.f32 0.0, %v518
      %v520 = vpop.f32.mrf.mxu0
      %521 = vdwg.mxu0
      %v524 = vsel %vm381, %v393, 0
      %526 = vmatpush.bf16.msra.mxu0 0
      %527 = vmatpush.bf16.msra.mxu0 0
      %528 = vmatpush.bf16.msra.mxu0 0
      %529 = vmatpush.bf16.msra.mxu0 0
      %530 = vmatpush.bf16.msra.mxu0 0
      %531 = vmatpush.bf16.msra.mxu0 0
      %532 = vmatpush.bf16.msra.mxu0 0
      %533 = vmatpush.bf16.msra.mxu0 %v420
      %534 = vmatmul.bf16.gmra.mxu0 %v524
      %v535 = vpop.f32.mrf.mxu0
      %v536 = vadd.f32 %v437, %v535
      %v537 = vpop.f32.mrf.mxu0
      %538 = vdwg.mxu0
      %v539 = vadd.f32 %v536, %v478
      %v540 = vadd.f32 %v539, %v519
      %v541 = vmul.f32 %v540, 0.25
      %vm542 = vcmask 31744
      %543 = vst.msk [vmem:[%s290] sm:$0xff] %vm542, %v541
      %p544 = scmp.lt.s32.totalorder %s18, 1
      %s545 = scalar_select %p544, %s18, 1
      %s546 = smul.addr %s545, 8
      %s547 = scalar_lea.vmem %s7, %s546
      // Predicated region
      $region49: #{gat_forward.5} parent=47 // pred_check
        %p548 = pneg %p193
      $region50: #{gat_forward.5} parent=47 // pred_check_branch
        %550 = sbr.rel (%p548) target = $region52
      $region51: #{gat_forward.5} parent=47 // pred_region
        _
      $region52: #{gat_forward.5} parent=47 // pred_fallthru
        _
    $region48: #{gat_forward.5} parent=5 // pred_fallthru
      _
    %p551 = scmp.le.s32.totalorder 2, %s13
    // Predicated region
    $region53: #{gat_forward.5} parent=5 // pred_check
      %p552 = pneg %p551
    $region54: #{gat_forward.5} parent=5 // pred_check_branch
      %554 = sbr.rel (%p552) target = $region56
    $region55: #{gat_forward.5} parent=5 // pred_region
      %s555 = ssub.s32 %s13, 2
      // Predicated region
      $region57: #{gat_forward.5} parent=55 // pred_check
        %p556 = pneg %p199
      $region58: #{gat_forward.5} parent=55 // pred_check_branch
        %558 = sbr.rel (%p556) target = $region60
      $region59: #{gat_forward.5} parent=55 // pred_region
        %p559 = scmp.lt.s32.totalorder %s19, 1
        %s560 = scalar_select %p559, %s19, 1
        %s561 = smul.addr %s560, 8
        %s562 = scalar_lea.vmem %s7, %s561
      $region60: #{gat_forward.5} parent=55 // pred_fallthru
        _
    $region56: #{gat_forward.5} parent=5 // pred_fallthru
      _
  $region6: #{gat_forward.5} parent=0 // loop_footer
    %s17 = sadd.s32 1, %s13
  $region7: #{gat_forward.5} parent=0 // loop_footer_branch
    %12 = sbr.rel target = $region3
  $region8: #{gat_forward.5} parent=0 // loop_exit
    _

// kernel: gat_forward.4
$region0: #{gat_forward.4}
  #allocation0 [shape = 'u32[]', space=smem, size = 0x4, offset = 0x4, fixed_abs, tag = 'smem constant byte address 0x4 - core index']
  #allocation1 [shape = 'u32[72,128]{1,0:T(1,128)}', space=vmem, size = 0x9000, scoped, tag = 'internal scratch']
  %s0 = inlined_call_operand.vmem [shape: f32[16,32], index: 0, kind: input, shape index: {}, may-alias: {0,1}]
  %s1 = inlined_call_operand.vmem [shape: f32[16,32], index: 1, kind: input, shape index: {}, may-alias: {0,1}]
  %s2 = inlined_call_operand.vmem [shape: f32[32,16], index: 2, kind: input, shape index: {}]
  %s3 = inlined_call_operand.vmem [shape: f32[32,32], index: 3, kind: input, shape index: {}]
  %s4 = inlined_call_operand.vmem [shape: f32[32,4], index: 4, kind: input, shape index: {}]
  %s5 = inlined_call_operand.vmem [shape: f32[4,32], index: 5, kind: input, shape index: {}]
  %s6 = inlined_call_operand.vmem [shape: f32[16,16], index: 6, kind: input, shape index: {}]
  %s7 = inlined_call_operand.vmem [shape: f32[16,32], index: 7, kind: output, shape index: {}]
  %s8 = sld [smem:[#allocation0]]
  $region61: #{gat_forward.4} parent=0
    _
  %s10 = ssub.s32 1, %s8
  %s11 = scalar_select 0, %s10, %s8
  loop: start=0, step=1, limit=4
  $region2: #{gat_forward.4} parent=0 // loop_pre_header
    _
  $region3: #{gat_forward.4} parent=0 // loop_header
    %s13 = sphi 0, %s17
    %p14 = scmp.ge.s32.totalorder %s13, 4
    %s23 = sphi 0, %s25
    %s26 = sphi 0, %s23
    %s27 = sphi 0, %s26
    %s43 = sphi 0, %s27
    %s47 = sphi 0, %s47
    %s49 = sphi 0, %s47
    %s50 = sphi 0, %s49
    %s64 = sphi 0, %s50
    %s68 = sphi 0, %s68
    %s70 = sphi 0, %s68
    %s71 = sphi 0, %s70
    %s85 = sphi 0, %s71
    %s89 = sphi 0, %s89
    %s91 = sphi 0, %s89
    %s92 = sphi 0, %s91
    %s106 = sphi 0, %s92
    %s110 = sphi 0, %s110
    %s112 = sphi 0, %s110
    %s113 = sphi 0, %s112
    %s127 = sphi 0, %s113
    %s131 = sphi 0, %s131
    %s133 = sphi 0, %s131
    %s134 = sphi 0, %s133
    %s148 = sphi 0, %s134
    %s154 = sphi 0, %s156
    %s157 = sphi 0, %s154
    %s158 = sphi 0, %s157
    %s174 = sphi 0, %s158
    %s180 = sphi 0, %s182
    %s183 = sphi 0, %s180
    %s184 = sphi 0, %s183
    %s200 = sphi 0, %s184
  $region4: #{gat_forward.4} parent=0 // loop_header_branch
    %16 = sbr.rel (%p14) target = $region8
  $region5: #{gat_forward.4} parent=0 // loop_body
    %s18 = ssub.s32 %s13, 1
    %s19 = ssub.s32 %s13, 2
    %s20 = sadd.s32 %s13, 1
    %s21 = ssub.s32 %s13, %s20
    %p22 = scmp.eq.s32.totalorder %s21, 0
    %s24 = sadd.s32 %s23, 1
    %s25 = scalar_select %p22, %s23, %s24
    %p28 = pneg %p22
    %p29 = scmp.eq.s32.totalorder %s13, 1
    %p30 = por %p28, %p29
    %p31 = scmp.ne.s32.totalorder %s23, %s26
    %p32 = scmp.eq.s32.totalorder %s13, 0
    %p33 = por %p31, %p32
    %p34 = scmp.ne.s32.totalorder %s23, %s26
    %p35 = scmp.eq.s32.totalorder %s18, 1
    %p36 = por %p34, %p35
    %p37 = scmp.ne.s32.totalorder %s26, %s27
    %p38 = scmp.eq.s32.totalorder %s18, 0
    %p39 = por %p37, %p38
    %p40 = scmp.ne.s32.totalorder %s26, %s27
    %p41 = scmp.eq.s32.totalorder %s19, 1
    %p42 = por %p40, %p41
    %p44 = scmp.ne.s32.totalorder %s27, %s43
    %p45 = scmp.eq.s32.totalorder %s19, 0
    %p46 = por %p44, %p45
    %s48 = sadd.s32 %s47, 1
    %p51 = scmp.eq.s32.totalorder %s13, 1
    %p52 = scmp.ne.s32.totalorder %s47, %s49
    %p53 = scmp.eq.s32.totalorder %s13, 0
    %p54 = por %p52, %p53
    %p55 = scmp.ne.s32.totalorder %s47, %s49
    %p56 = scmp.eq.s32.totalorder %s18, 1
    %p57 = por %p55, %p56
    %p58 = scmp.ne.s32.totalorder %s49, %s50
    %p59 = scmp.eq.s32.totalorder %s18, 0
    %p60 = por %p58, %p59
    %p61 = scmp.ne.s32.totalorder %s49, %s50
    %p62 = scmp.eq.s32.totalorder %s19, 1
    %p63 = por %p61, %p62
    %p65 = scmp.ne.s32.totalorder %s50, %s64
    %p66 = scmp.eq.s32.totalorder %s19, 0
    %p67 = por %p65, %p66
    %s69 = sadd.s32 %s68, 1
    %p72 = scmp.eq.s32.totalorder %s13, 1
    %p73 = scmp.ne.s32.totalorder %s68, %s70
    %p74 = scmp.eq.s32.totalorder %s13, 0
    %p75 = por %p73, %p74
    %p76 = scmp.ne.s32.totalorder %s68, %s70
    %p77 = scmp.eq.s32.totalorder %s18, 1
    %p78 = por %p76, %p77
    %p79 = scmp.ne.s32.totalorder %s70, %s71
    %p80 = scmp.eq.s32.totalorder %s18, 0
    %p81 = por %p79, %p80
    %p82 = scmp.ne.s32.totalorder %s70, %s71
    %p83 = scmp.eq.s32.totalorder %s19, 1
    %p84 = por %p82, %p83
    %p86 = scmp.ne.s32.totalorder %s71, %s85
    %p87 = scmp.eq.s32.totalorder %s19, 0
    %p88 = por %p86, %p87
    %s90 = sadd.s32 %s89, 1
    %p93 = scmp.eq.s32.totalorder %s13, 1
    %p94 = scmp.ne.s32.totalorder %s89, %s91
    %p95 = scmp.eq.s32.totalorder %s13, 0
    %p96 = por %p94, %p95
    %p97 = scmp.ne.s32.totalorder %s89, %s91
    %p98 = scmp.eq.s32.totalorder %s18, 1
    %p99 = por %p97, %p98
    %p100 = scmp.ne.s32.totalorder %s91, %s92
    %p101 = scmp.eq.s32.totalorder %s18, 0
    %p102 = por %p100, %p101
    %p103 = scmp.ne.s32.totalorder %s91, %s92
    %p104 = scmp.eq.s32.totalorder %s19, 1
    %p105 = por %p103, %p104
    %p107 = scmp.ne.s32.totalorder %s92, %s106
    %p108 = scmp.eq.s32.totalorder %s19, 0
    %p109 = por %p107, %p108
    %s111 = sadd.s32 %s110, 1
    %p114 = scmp.eq.s32.totalorder %s13, 1
    %p115 = scmp.ne.s32.totalorder %s110, %s112
    %p116 = scmp.eq.s32.totalorder %s13, 0
    %p117 = por %p115, %p116
    %p118 = scmp.ne.s32.totalorder %s110, %s112
    %p119 = scmp.eq.s32.totalorder %s18, 1
    %p120 = por %p118, %p119
    %p121 = scmp.ne.s32.totalorder %s112, %s113
    %p122 = scmp.eq.s32.totalorder %s18, 0
    %p123 = por %p121, %p122
    %p124 = scmp.ne.s32.totalorder %s112, %s113
    %p125 = scmp.eq.s32.totalorder %s19, 1
    %p126 = por %p124, %p125
    %p128 = scmp.ne.s32.totalorder %s113, %s127
    %p129 = scmp.eq.s32.totalorder %s19, 0
    %p130 = por %p128, %p129
    %s132 = sadd.s32 %s131, 1
    %p135 = scmp.eq.s32.totalorder %s13, 1
    %p136 = scmp.ne.s32.totalorder %s131, %s133
    %p137 = scmp.eq.s32.totalorder %s13, 0
    %p138 = por %p136, %p137
    %p139 = scmp.ne.s32.totalorder %s131, %s133
    %p140 = scmp.eq.s32.totalorder %s18, 1
    %p141 = por %p139, %p140
    %p142 = scmp.ne.s32.totalorder %s133, %s134
    %p143 = scmp.eq.s32.totalorder %s18, 0
    %p144 = por %p142, %p143
    %p145 = scmp.ne.s32.totalorder %s133, %s134
    %p146 = scmp.eq.s32.totalorder %s19, 1
    %p147 = por %p145, %p146
    %p149 = scmp.ne.s32.totalorder %s134, %s148
    %p150 = scmp.eq.s32.totalorder %s19, 0
    %p151 = por %p149, %p150
    %s152 = ssub.s32 %s13, %s20
    %p153 = scmp.eq.s32.totalorder %s152, 0
    %s155 = sadd.s32 %s154, 1
    %s156 = scalar_select %p153, %s154, %s155
    %p159 = pneg %p153
    %p160 = scmp.eq.s32.totalorder %s13, 1
    %p161 = por %p159, %p160
    %p162 = scmp.ne.s32.totalorder %s154, %s157
    %p163 = scmp.eq.s32.totalorder %s13, 0
    %p164 = por %p162, %p163
    %p165 = scmp.ne.s32.totalorder %s154, %s157
    %p166 = scmp.eq.s32.totalorder %s18, 1
    %p167 = por %p165, %p166
    %p168 = scmp.ne.s32.totalorder %s157, %s158
    %p169 = scmp.eq.s32.totalorder %s18, 0
    %p170 = por %p168, %p169
    %p171 = scmp.ne.s32.totalorder %s157, %s158
    %p172 = scmp.eq.s32.totalorder %s19, 1
    %p173 = por %p171, %p172
    %p175 = scmp.ne.s32.totalorder %s158, %s174
    %p176 = scmp.eq.s32.totalorder %s19, 0
    %p177 = por %p175, %p176
    %s178 = ssub.s32 %s13, %s20
    %p179 = scmp.eq.s32.totalorder %s178, 0
    %s181 = sadd.s32 %s180, 1
    %s182 = scalar_select %p179, %s180, %s181
    %p185 = pneg %p179
    %p186 = scmp.eq.s32.totalorder %s13, 1
    %p187 = por %p185, %p186
    %p188 = scmp.ne.s32.totalorder %s180, %s183
    %p189 = scmp.eq.s32.totalorder %s13, 0
    %p190 = por %p188, %p189
    %p191 = scmp.ne.s32.totalorder %s180, %s183
    %p192 = scmp.eq.s32.totalorder %s18, 1
    %p193 = por %p191, %p192
    %p194 = scmp.ne.s32.totalorder %s183, %s184
    %p195 = scmp.eq.s32.totalorder %s18, 0
    %p196 = por %p194, %p195
    %p197 = scmp.ne.s32.totalorder %s183, %s184
    %p198 = scmp.eq.s32.totalorder %s19, 1
    %p199 = por %p197, %p198
    %p201 = scmp.ne.s32.totalorder %s184, %s200
    %p202 = scmp.eq.s32.totalorder %s19, 0
    %p203 = por %p201, %p202
    %p204 = scmp.le.s32.totalorder 1, %s13
    %p205 = scmp.lt.s32.totalorder %s13, 3
    %p206 = pnand %p204, %p205
    %p207 = pneg %p206
    // Predicated region
    $region9: #{gat_forward.4} parent=5 // pred_check
      _
    $region10: #{gat_forward.4} parent=5 // pred_check_branch
      %209 = sbr.rel (%p206) target = $region12
    $region11: #{gat_forward.4} parent=5 // pred_region
      %s210 = ssub.s32 %s13, 1
      // Predicated region
      $region13: #{gat_forward.4} parent=11 // pred_check
        %p211 = pneg %p60
      $region14: #{gat_forward.4} parent=11 // pred_check_branch
        %213 = sbr.rel (%p211) target = $region16
      $region15: #{gat_forward.4} parent=11 // pred_region
        _
      $region16: #{gat_forward.4} parent=11 // pred_fallthru
        _
      // Predicated region
      $region17: #{gat_forward.4} parent=11 // pred_check
        %p214 = pneg %p81
      $region18: #{gat_forward.4} parent=11 // pred_check_branch
        %216 = sbr.rel (%p214) target = $region20
      $region19: #{gat_forward.4} parent=11 // pred_region
        _
      $region20: #{gat_forward.4} parent=11 // pred_fallthru
        _
      // Predicated region
      $region21: #{gat_forward.4} parent=11 // pred_check
        %p217 = pneg %p102
      $region22: #{gat_forward.4} parent=11 // pred_check_branch
        %219 = sbr.rel (%p217) target = $region24
      $region23: #{gat_forward.4} parent=11 // pred_region
        _
      $region24: #{gat_forward.4} parent=11 // pred_fallthru
        _
      // Predicated region
      $region25: #{gat_forward.4} parent=11 // pred_check
        %p220 = pneg %p123
      $region26: #{gat_forward.4} parent=11 // pred_check_branch
        %222 = sbr.rel (%p220) target = $region28
      $region27: #{gat_forward.4} parent=11 // pred_region
        _
      $region28: #{gat_forward.4} parent=11 // pred_fallthru
        _
      // Predicated region
      $region29: #{gat_forward.4} parent=11 // pred_check
        %p223 = pneg %p144
      $region30: #{gat_forward.4} parent=11 // pred_check_branch
        %225 = sbr.rel (%p223) target = $region32
      $region31: #{gat_forward.4} parent=11 // pred_region
        _
      $region32: #{gat_forward.4} parent=11 // pred_fallthru
        _
    $region12: #{gat_forward.4} parent=5 // pred_fallthru
      _
    %p226 = scmp.lt.s32.totalorder %s13, 2
    // Predicated region
    $region33: #{gat_forward.4} parent=5 // pred_check
      %p227 = pneg %p226
    $region34: #{gat_forward.4} parent=5 // pred_check_branch
      %229 = sbr.rel (%p227) target = $region36
    $region35: #{gat_forward.4} parent=5 // pred_region
      // Predicated region
      $region37: #{gat_forward.4} parent=35 // pred_check
        %p230 = pneg %p33
      $region38: #{gat_forward.4} parent=35 // pred_check_branch
        %232 = sbr.rel (%p230) target = $region40
      $region39: #{gat_forward.4} parent=35 // pred_region
        %p233 = scmp.lt.s32.totalorder %s13, 1
        %s234 = scalar_select %p233, %s13, 1
        %s235 = smul.addr %s234, 8
        %s236 = scalar_lea.vmem %s0, %s235
      $region40: #{gat_forward.4} parent=35 // pred_fallthru
        _
      // Predicated region
      $region41: #{gat_forward.4} parent=35 // pred_check
        %p237 = pneg %p164
      $region42: #{gat_forward.4} parent=35 // pred_check_branch
        %239 = sbr.rel (%p237) target = $region44
      $region43: #{gat_forward.4} parent=35 // pred_region
        %p240 = scmp.lt.s32.totalorder %s13, 1
        %s241 = scalar_select %p240, %s13, 1
        %s242 = smul.addr %s241, 8
        %s243 = scalar_lea.vmem %s6, %s242
      $region44: #{gat_forward.4} parent=35 // pred_fallthru
        _
    $region36: #{gat_forward.4} parent=5 // pred_fallthru
      _
    %p244 = scmp.le.s32.totalorder 1, %s13
    %p245 = scmp.lt.s32.totalorder %s13, 3
    %p246 = pnand %p244, %p245
    %p247 = pneg %p246
    // Predicated region
    $region45: #{gat_forward.4} parent=5 // pred_check
      _
    $region46: #{gat_forward.4} parent=5 // pred_check_branch
      %249 = sbr.rel (%p246) target = $region48
    $region47: #{gat_forward.4} parent=5 // pred_region
      %s250 = ssub.s32 %s13, 1
      %p251 = scmp.lt.s32.totalorder %s18, 1
      %s252 = scalar_select %p251, %s18, 1
      %s253 = smul.addr %s252, 8
      %s254 = scalar_lea.vmem %s0, %s253
      %p255 = pneg %p39
      %p256 = pneg %p36
      %p257 = pneg %p60
      %p258 = pneg %p57
      %p259 = pneg %p81
      %p260 = pneg %p78
      %p261 = pneg %p102
      %p262 = pneg %p99
      %p263 = pneg %p123
      %p264 = pneg %p120
      %p265 = pneg %p144
      %p266 = pneg %p141
      %p267 = scmp.lt.s32.totalorder %s18, 1
      %s268 = scalar_select %p267, %s18, 1
      %s269 = smul.addr %s268, 8
      %s270 = scalar_lea.vmem %s6, %s269
      %p271 = pneg %p170
      %p272 = pneg %p167
      %p273 = pneg %p196
      %p274 = pneg %p193
      %p275 = scmp.lt.s32.totalorder %s18, 1
      %s276 = scalar_select %p275, %s18, 1
      %s277 = smul.addr %s276, 8
      %s278 = scalar_lea.vmem %s7, %s277
      %p279 = scmp.lt.s32.totalorder %s18, 1
      %s280 = scalar_select %p279, %s18, 1
      %s281 = smul.addr %s280, 8
      %s282 = scalar_lea.vmem %s0, %s281
      %p283 = scmp.lt.s32.totalorder %s18, 1
      %s284 = scalar_select %p283, %s18, 1
      %s285 = smul.addr %s284, 8
      %s286 = scalar_lea.vmem %s6, %s285
      %p287 = scmp.lt.s32.totalorder %s18, 1
      %s288 = scalar_select %p287, %s18, 1
      %s289 = smul.addr %s288, 8
      %s290 = scalar_lea.vmem %s7, %s289
      %v292 = vld [vmem:[%s282] sm:$0xff]
      %v293 = vpack.c.bf16 %v292, %v292
      %v294 = vld [vmem:[%s1] sm:$0xff]
      %v295 = vld [vmem:[%s1 + $0x8] sm:$0xff]
      %v296 = vpack.c.bf16 %v295, %v294
      %v297 = vld [vmem:[%s2] sm:$0xff]
      %v298 = vld [vmem:[%s2 + $0x8] sm:$0xff]
      %v299 = vld [vmem:[%s2 + $0x10] sm:$0xff]
      %v300 = vld [vmem:[%s2 + $0x18] sm:$0xff]
      %v301 = vpack.c.bf16 %v298, %v297
      %v302 = vpack.c.bf16 %v300, %v299
      %v303 = vld [vmem:[%s3] sm:$0xff]
      %v304 = vld [vmem:[%s3 + $0x8] sm:$0xff]
      %v305 = vld [vmem:[%s3 + $0x10] sm:$0xff]
      %v306 = vld [vmem:[%s3 + $0x18] sm:$0xff]
      %v307 = vpack.c.bf16 %v304, %v303
      %v308 = vpack.c.bf16 %v306, %v305
      %v309 = vld [vmem:[%s4] sm:$0xff]
      %v310 = vld [vmem:[%s4 + $0x8] sm:$0xff]
      %v311 = vld [vmem:[%s4 + $0x10] sm:$0xff]
      %v312 = vld [vmem:[%s4 + $0x18] sm:$0xff]
      %v313 = vpack.c.bf16 %v310, %v309
      %v314 = vpack.c.bf16 %v312, %v311
      %v315 = vld [vmem:[%s5] sm:$0xf]
      %v316 = vpack.c.bf16 %v315, %v315
      %v317 = vld [vmem:[%s286] sm:$0xff]
      %vm318 = vcmask 261120
      %v320 = vsel %vm318, %v296, 0
      %322 = vmatpush.bf16.msra.mxu0 0
      %323 = vmatpush.bf16.msra.mxu0 0
      %324 = vmatpush.bf16.msra.mxu0 0
      %325 = vmatpush.bf16.msra.mxu0 0
      %326 = vmatpush.bf16.msra.mxu0 0
      %327 = vmatpush.bf16.msra.mxu0 0
      %328 = vmatpush.bf16.msra.mxu0 %v308
      %329 = vmatpush.bf16.msra.mxu0 %v307
      %330 = vmatmul.bf16.gmra.mxu0 %v320
      %v331 = vpop.f32.mrf.mxu0
      %v332 = vadd.f32 0.0, %v331
      %v333 = vpop.f32.mrf.mxu0
      %v334 = vadd.f32 0.0, %v333
      %335 = vdwg.mxu0
      %v336 = vpack.c.bf16 %v332, %v332
      %v337 = vpack.c.bf16 %v334, %v334
      %v339 = vsel %vm318, %v293, 0
      %341 = vmatpush.bf16.msra.mxu0 0
      %342 = vmatpush.bf16.msra.mxu0 0
      %343 = vmatpush.bf16.msra.mxu0 0
      %344 = vmatpush.bf16.msra.mxu0 0
      %345 = vmatpush.bf16.msra.mxu0 0
      %346 = vmatpush.bf16.msra.mxu0 0
      %347 = vmatpush.bf16.msra.mxu0 %v314
      %348 = vmatpush.bf16.msra.mxu0 %v313
      %349 = vmatmul.bf16.gmra.mxu0 %v339
      %v350 = vpop.f32.mrf.mxu0
      %v351 = vadd.f32 0.0, %v350
      %v352 = vpop.f32.mrf.mxu0
      %353 = vdwg.mxu0
      %v355 = vsel %vm318, %v316, 0
      %357 = vmatpush.bf16.msra.mxu0 0
      %358 = vmatpush.bf16.msra.mxu0 0
      %359 = vmatpush.bf16.msra.mxu0 0
      %360 = vmatpush.bf16.msra.mxu0 0
      %361 = vmatpush.bf16.msra.mxu0 0
      %362 = vmatpush.bf16.msra.mxu0 0
      %363 = vmatpush.bf16.msra.mxu0 %v302
      %364 = vmatpush.bf16.msra.mxu0 %v301
      %365 = vmatmul.bf16.gmra.mxu0 %v355
      %v366 = vpop.f32.mrf.mxu0
      %v367 = vadd.f32 0.0, %v366
      %v368 = vpop.f32.mrf.mxu0
      %369 = vdwg.mxu0
      %371 = vset.pattern.permute.xlu0 0
      %372 = vperm.xlu0 %371, %v351
      %v373 = vpop.permute.xlu0 %372
      %v375 = vperm.slane %v367, 0
      %v376 = vadd.f32 %v373, %v375
      %vm377 = vcmp.gt.f32.partialorder %v376, 0.0
      %v378 = vmul.f32 %v376, 0.2
      %v379 = vsel %vm377, %v376, %v378
      %v380 = vadd.f32 %v379, %v317
      %vm381 = vcmask 130048
      %v382 = vsel %vm381, %v380, -inf
      %383 = vmax.xlane.f32.xlu0 %v382
      %v384 = vpop.xlane.xlu0 %383
      %v385 = vsub.f32 %v380, %v384
      %v386 = vmul.f32 %v385, 1.442695
      %v387 = vpow.pop %v386
      %v388 = vsel %vm381, %v387, 0.0
      %389 = vadd.xlane.f32.xlu0 %v388
      %v390 = vpop.xlane.xlu0 %389
      %v391 = vrcp.pop %v390
      %v392 = vmul.f32 %v387, %v391
      %v393 = vpack.c.bf16 %v392, %v392
      %v396 = vunpack.c.l.b16 %v336
      %v397 = vunpack.c.l.b16 %v337
      %v398 = vpack.c.b16 %v397, %v396
      %v401 = vsel %vm381, %v393, 0
      %403 = vmatpush.bf16.msra.mxu0 0
      %404 = vmatpush.bf16.msra.mxu0 0
      %405 = vmatpush.bf16.msra.mxu0 0
      %406 = vmatpush.bf16.msra.mxu0 0
      %407 = vmatpush.bf16.msra.mxu0 0
      %408 = vmatpush.bf16.msra.mxu0 0
      %409 = vmatpush.bf16.msra.mxu0 0
      %410 = vmatpush.bf16.msra.mxu0 %v398
      %411 = vmatmul.bf16.gmra.mxu0 %v401
      %v412 = vpop.f32.mrf.mxu0
      %v413 = vadd.f32 0.0, %v412
      %v414 = vpop.f32.mrf.mxu0
      %415 = vdwg.mxu0
      %416 = vset.pattern.permute.xlu0 1
      %417 = vperm.xlu0 %416, %v351
      %v418 = vpop.permute.xlu0 %417
      %v420 = vperm.slane %v367, 1
      %v421 = vadd.f32 %v418, %v420
      %vm422 = vcmp.gt.f32.partialorder %v421, 0.0
      %v423 = vmul.f32 %v421, 0.2
      %v424 = vsel %vm422, %v421, %v423
      %v425 = vadd.f32 %v424, %v317
      %v426 = vsel %vm381, %v425, -inf
      %427 = vmax.xlane.f32.xlu0 %v426
      %v428 = vpop.xlane.xlu0 %427
      %v429 = vsub.f32 %v425, %v428
      %v430 = vmul.f32 %v429, 1.442695
      %v431 = vpow.pop %v430
      %v432 = vsel %vm381, %v431, 0.0
      %433 = vadd.xlane.f32.xlu0 %v432
      %v434 = vpop.xlane.xlu0 %433
      %v435 = vrcp.pop %v434
      %v436 = vmul.f32 %v431, %v435
      %v437 = vpack.c.bf16 %v436, %v436
      %438 = vrot.lane.b32.xlu0 %v398, 120
      %v439 = vpop.permute.xlu0 %438
      %v442 = vsel %vm381, %v437, 0
      %444 = vmatpush.bf16.msra.mxu0 0
      %445 = vmatpush.bf16.msra.mxu0 0
      %446 = vmatpush.bf16.msra.mxu0 0
      %447 = vmatpush.bf16.msra.mxu0 0
      %448 = vmatpush.bf16.msra.mxu0 0
      %449 = vmatpush.bf16.msra.mxu0 0
      %450 = vmatpush.bf16.msra.mxu0 0
      %451 = vmatpush.bf16.msra.mxu0 %v439
      %452 = vmatmul.bf16.gmra.mxu0 %v442
      %v453 = vpop.f32.mrf.mxu0
      %v454 = vadd.f32 0.0, %v453
      %v455 = vpop.f32.mrf.mxu0
      %456 = vdwg.mxu0
      %457 = vset.pattern.permute.xlu0 2
      %458 = vperm.xlu0 %457, %v351
      %v459 = vpop.permute.xlu0 %458
      %v461 = vperm.slane %v367, 2
      %v462 = vadd.f32 %v459, %v461
      %vm463 = vcmp.gt.f32.partialorder %v462, 0.0
      %v464 = vmul.f32 %v462, 0.2
      %v465 = vsel %vm463, %v462, %v464
      %v466 = vadd.f32 %v465, %v317
      %v467 = vsel %vm381, %v466, -inf
      %468 = vmax.xlane.f32.xlu0 %v467
      %v469 = vpop.xlane.xlu0 %468
      %v470 = vsub.f32 %v466, %v469
      %v471 = vmul.f32 %v470, 1.442695
      %v472 = vpow.pop %v471
      %v473 = vsel %vm381, %v472, 0.0
      %474 = vadd.xlane.f32.xlu0 %v473
      %v475 = vpop.xlane.xlu0 %474
      %v476 = vrcp.pop %v475
      %v477 = vmul.f32 %v472, %v476
      %v478 = vpack.c.bf16 %v477, %v477
      %479 = vrot.lane.b32.xlu0 %v398, 112
      %v480 = vpop.permute.xlu0 %479
      %v483 = vsel %vm381, %v478, 0
      %485 = vmatpush.bf16.msra.mxu0 0
      %486 = vmatpush.bf16.msra.mxu0 0
      %487 = vmatpush.bf16.msra.mxu0 0
      %488 = vmatpush.bf16.msra.mxu0 0
      %489 = vmatpush.bf16.msra.mxu0 0
      %490 = vmatpush.bf16.msra.mxu0 0
      %491 = vmatpush.bf16.msra.mxu0 0
      %492 = vmatpush.bf16.msra.mxu0 %v480
      %493 = vmatmul.bf16.gmra.mxu0 %v483
      %v494 = vpop.f32.mrf.mxu0
      %v495 = vadd.f32 0.0, %v494
      %v496 = vpop.f32.mrf.mxu0
      %497 = vdwg.mxu0
      %498 = vset.pattern.permute.xlu0 3
      %499 = vperm.xlu0 %498, %v351
      %v500 = vpop.permute.xlu0 %499
      %v502 = vperm.slane %v367, 3
      %v503 = vadd.f32 %v500, %v502
      %vm504 = vcmp.gt.f32.partialorder %v503, 0.0
      %v505 = vmul.f32 %v503, 0.2
      %v506 = vsel %vm504, %v503, %v505
      %v507 = vadd.f32 %v506, %v317
      %v508 = vsel %vm381, %v507, -inf
      %509 = vmax.xlane.f32.xlu0 %v508
      %v510 = vpop.xlane.xlu0 %509
      %v511 = vsub.f32 %v507, %v510
      %v512 = vmul.f32 %v511, 1.442695
      %v513 = vpow.pop %v512
      %v514 = vsel %vm381, %v513, 0.0
      %515 = vadd.xlane.f32.xlu0 %v514
      %v516 = vpop.xlane.xlu0 %515
      %v517 = vrcp.pop %v516
      %v518 = vmul.f32 %v513, %v517
      %v519 = vpack.c.bf16 %v518, %v518
      %520 = vrot.lane.b32.xlu0 %v398, 104
      %v521 = vpop.permute.xlu0 %520
      %v524 = vsel %vm381, %v519, 0
      %526 = vmatpush.bf16.msra.mxu0 0
      %527 = vmatpush.bf16.msra.mxu0 0
      %528 = vmatpush.bf16.msra.mxu0 0
      %529 = vmatpush.bf16.msra.mxu0 0
      %530 = vmatpush.bf16.msra.mxu0 0
      %531 = vmatpush.bf16.msra.mxu0 0
      %532 = vmatpush.bf16.msra.mxu0 0
      %533 = vmatpush.bf16.msra.mxu0 %v521
      %534 = vmatmul.bf16.gmra.mxu0 %v524
      %v535 = vpop.f32.mrf.mxu0
      %v536 = vadd.f32 0.0, %v535
      %v537 = vpop.f32.mrf.mxu0
      %538 = vdwg.mxu0
      %540 = vrot.lane.b32.xlu0 %v454, 8
      %v541 = vpop.permute.xlu0 %540
      %544 = vrot.lane.b32.xlu0 %v495, 16
      %v545 = vpop.permute.xlu0 %544
      %548 = vrot.lane.b32.xlu0 %v536, 24
      %v549 = vpop.permute.xlu0 %548
      %vm551 = vcmask 64512
      %v552 = vsel %vm551, %v413, %v541
      %v553 = vsel %vm381, %v552, %v545
      %vm554 = vcmask 195584
      %v555 = vsel %vm554, %v553, %v549
      %vm556 = vcmp.gt.f32.partialorder %v555, 0.0
      %v557 = vmul.f32 %v555, 1.442695
      %v558 = vpow.pop %v557
      %v559 = vsub.f32 %v558, 1.0
      %v560 = vsel %vm556, %v555, %v559
      %561 = vst.msk [vmem:[%s290] sm:$0xff] %vm318, %v560
      %p562 = scmp.lt.s32.totalorder %s18, 1
      %s563 = scalar_select %p562, %s18, 1
      %s564 = smul.addr %s563, 8
      %s565 = scalar_lea.vmem %s7, %s564
      // Predicated region
      $region49: #{gat_forward.4} parent=47 // pred_check
        %p566 = pneg %p193
      $region50: #{gat_forward.4} parent=47 // pred_check_branch
        %568 = sbr.rel (%p566) target = $region52
      $region51: #{gat_forward.4} parent=47 // pred_region
        _
      $region52: #{gat_forward.4} parent=47 // pred_fallthru
        _
    $region48: #{gat_forward.4} parent=5 // pred_fallthru
      _
    %p569 = scmp.le.s32.totalorder 2, %s13
    // Predicated region
    $region53: #{gat_forward.4} parent=5 // pred_check
      %p570 = pneg %p569
    $region54: #{gat_forward.4} parent=5 // pred_check_branch
      %572 = sbr.rel (%p570) target = $region56
    $region55: #{gat_forward.4} parent=5 // pred_region
      %s573 = ssub.s32 %s13, 2
      // Predicated region
      $region57: #{gat_forward.4} parent=55 // pred_check
        %p574 = pneg %p199
      $region58: #{gat_forward.4} parent=55 // pred_check_branch
        %576 = sbr.rel (%p574) target = $region60
      $region59: #{gat_forward.4} parent=55 // pred_region
        %p577 = scmp.lt.s32.totalorder %s19, 1
        %s578 = scalar_select %p577, %s19, 1
        %s579 = smul.addr %s578, 8
        %s580 = scalar_lea.vmem %s7, %s579
      $region60: #{gat_forward.4} parent=55 // pred_fallthru
        _
    $region56: #{gat_forward.4} parent=5 // pred_fallthru
      _
  $region6: #{gat_forward.4} parent=0 // loop_footer
    %s17 = sadd.s32 1, %s13
  $region7: #{gat_forward.4} parent=0 // loop_footer_branch
    %12 = sbr.rel target = $region3
  $region8: #{gat_forward.4} parent=0 // loop_exit
    _

// kernel: gat_forward.3
$region0: #{gat_forward.3}
  #allocation0 [shape = 'u32[]', space=smem, size = 0x4, offset = 0x4, fixed_abs, tag = 'smem constant byte address 0x4 - core index']
  #allocation1 [shape = 'u32[72,128]{1,0:T(1,128)}', space=vmem, size = 0x9000, scoped, tag = 'internal scratch']
  %s0 = inlined_call_operand.vmem [shape: f32[16,8], index: 0, kind: input, shape index: {}, may-alias: {0,1}]
  %s1 = inlined_call_operand.vmem [shape: f32[16,8], index: 1, kind: input, shape index: {}, may-alias: {0,1}]
  %s2 = inlined_call_operand.vmem [shape: f32[8,16], index: 2, kind: input, shape index: {}]
  %s3 = inlined_call_operand.vmem [shape: f32[8,32], index: 3, kind: input, shape index: {}]
  %s4 = inlined_call_operand.vmem [shape: f32[8,4], index: 4, kind: input, shape index: {}]
  %s5 = inlined_call_operand.vmem [shape: f32[4,8], index: 5, kind: input, shape index: {}]
  %s6 = inlined_call_operand.vmem [shape: f32[16,16], index: 6, kind: input, shape index: {}]
  %s7 = inlined_call_operand.vmem [shape: f32[16,32], index: 7, kind: output, shape index: {}]
  %s8 = sld [smem:[#allocation0]]
  $region61: #{gat_forward.3} parent=0
    _
  %s10 = ssub.s32 1, %s8
  %s11 = scalar_select 0, %s10, %s8
  loop: start=0, step=1, limit=4
  $region2: #{gat_forward.3} parent=0 // loop_pre_header
    _
  $region3: #{gat_forward.3} parent=0 // loop_header
    %s13 = sphi 0, %s17
    %p14 = scmp.ge.s32.totalorder %s13, 4
    %s23 = sphi 0, %s25
    %s26 = sphi 0, %s23
    %s27 = sphi 0, %s26
    %s43 = sphi 0, %s27
    %s47 = sphi 0, %s47
    %s49 = sphi 0, %s47
    %s50 = sphi 0, %s49
    %s64 = sphi 0, %s50
    %s68 = sphi 0, %s68
    %s70 = sphi 0, %s68
    %s71 = sphi 0, %s70
    %s85 = sphi 0, %s71
    %s89 = sphi 0, %s89
    %s91 = sphi 0, %s89
    %s92 = sphi 0, %s91
    %s106 = sphi 0, %s92
    %s110 = sphi 0, %s110
    %s112 = sphi 0, %s110
    %s113 = sphi 0, %s112
    %s127 = sphi 0, %s113
    %s131 = sphi 0, %s131
    %s133 = sphi 0, %s131
    %s134 = sphi 0, %s133
    %s148 = sphi 0, %s134
    %s154 = sphi 0, %s156
    %s157 = sphi 0, %s154
    %s158 = sphi 0, %s157
    %s174 = sphi 0, %s158
    %s180 = sphi 0, %s182
    %s183 = sphi 0, %s180
    %s184 = sphi 0, %s183
    %s200 = sphi 0, %s184
  $region4: #{gat_forward.3} parent=0 // loop_header_branch
    %16 = sbr.rel (%p14) target = $region8
  $region5: #{gat_forward.3} parent=0 // loop_body
    %s18 = ssub.s32 %s13, 1
    %s19 = ssub.s32 %s13, 2
    %s20 = sadd.s32 %s13, 1
    %s21 = ssub.s32 %s13, %s20
    %p22 = scmp.eq.s32.totalorder %s21, 0
    %s24 = sadd.s32 %s23, 1
    %s25 = scalar_select %p22, %s23, %s24
    %p28 = pneg %p22
    %p29 = scmp.eq.s32.totalorder %s13, 1
    %p30 = por %p28, %p29
    %p31 = scmp.ne.s32.totalorder %s23, %s26
    %p32 = scmp.eq.s32.totalorder %s13, 0
    %p33 = por %p31, %p32
    %p34 = scmp.ne.s32.totalorder %s23, %s26
    %p35 = scmp.eq.s32.totalorder %s18, 1
    %p36 = por %p34, %p35
    %p37 = scmp.ne.s32.totalorder %s26, %s27
    %p38 = scmp.eq.s32.totalorder %s18, 0
    %p39 = por %p37, %p38
    %p40 = scmp.ne.s32.totalorder %s26, %s27
    %p41 = scmp.eq.s32.totalorder %s19, 1
    %p42 = por %p40, %p41
    %p44 = scmp.ne.s32.totalorder %s27, %s43
    %p45 = scmp.eq.s32.totalorder %s19, 0
    %p46 = por %p44, %p45
    %s48 = sadd.s32 %s47, 1
    %p51 = scmp.eq.s32.totalorder %s13, 1
    %p52 = scmp.ne.s32.totalorder %s47, %s49
    %p53 = scmp.eq.s32.totalorder %s13, 0
    %p54 = por %p52, %p53
    %p55 = scmp.ne.s32.totalorder %s47, %s49
    %p56 = scmp.eq.s32.totalorder %s18, 1
    %p57 = por %p55, %p56
    %p58 = scmp.ne.s32.totalorder %s49, %s50
    %p59 = scmp.eq.s32.totalorder %s18, 0
    %p60 = por %p58, %p59
    %p61 = scmp.ne.s32.totalorder %s49, %s50
    %p62 = scmp.eq.s32.totalorder %s19, 1
    %p63 = por %p61, %p62
    %p65 = scmp.ne.s32.totalorder %s50, %s64
    %p66 = scmp.eq.s32.totalorder %s19, 0
    %p67 = por %p65, %p66
    %s69 = sadd.s32 %s68, 1
    %p72 = scmp.eq.s32.totalorder %s13, 1
    %p73 = scmp.ne.s32.totalorder %s68, %s70
    %p74 = scmp.eq.s32.totalorder %s13, 0
    %p75 = por %p73, %p74
    %p76 = scmp.ne.s32.totalorder %s68, %s70
    %p77 = scmp.eq.s32.totalorder %s18, 1
    %p78 = por %p76, %p77
    %p79 = scmp.ne.s32.totalorder %s70, %s71
    %p80 = scmp.eq.s32.totalorder %s18, 0
    %p81 = por %p79, %p80
    %p82 = scmp.ne.s32.totalorder %s70, %s71
    %p83 = scmp.eq.s32.totalorder %s19, 1
    %p84 = por %p82, %p83
    %p86 = scmp.ne.s32.totalorder %s71, %s85
    %p87 = scmp.eq.s32.totalorder %s19, 0
    %p88 = por %p86, %p87
    %s90 = sadd.s32 %s89, 1
    %p93 = scmp.eq.s32.totalorder %s13, 1
    %p94 = scmp.ne.s32.totalorder %s89, %s91
    %p95 = scmp.eq.s32.totalorder %s13, 0
    %p96 = por %p94, %p95
    %p97 = scmp.ne.s32.totalorder %s89, %s91
    %p98 = scmp.eq.s32.totalorder %s18, 1
    %p99 = por %p97, %p98
    %p100 = scmp.ne.s32.totalorder %s91, %s92
    %p101 = scmp.eq.s32.totalorder %s18, 0
    %p102 = por %p100, %p101
    %p103 = scmp.ne.s32.totalorder %s91, %s92
    %p104 = scmp.eq.s32.totalorder %s19, 1
    %p105 = por %p103, %p104
    %p107 = scmp.ne.s32.totalorder %s92, %s106
    %p108 = scmp.eq.s32.totalorder %s19, 0
    %p109 = por %p107, %p108
    %s111 = sadd.s32 %s110, 1
    %p114 = scmp.eq.s32.totalorder %s13, 1
    %p115 = scmp.ne.s32.totalorder %s110, %s112
    %p116 = scmp.eq.s32.totalorder %s13, 0
    %p117 = por %p115, %p116
    %p118 = scmp.ne.s32.totalorder %s110, %s112
    %p119 = scmp.eq.s32.totalorder %s18, 1
    %p120 = por %p118, %p119
    %p121 = scmp.ne.s32.totalorder %s112, %s113
    %p122 = scmp.eq.s32.totalorder %s18, 0
    %p123 = por %p121, %p122
    %p124 = scmp.ne.s32.totalorder %s112, %s113
    %p125 = scmp.eq.s32.totalorder %s19, 1
    %p126 = por %p124, %p125
    %p128 = scmp.ne.s32.totalorder %s113, %s127
    %p129 = scmp.eq.s32.totalorder %s19, 0
    %p130 = por %p128, %p129
    %s132 = sadd.s32 %s131, 1
    %p135 = scmp.eq.s32.totalorder %s13, 1
    %p136 = scmp.ne.s32.totalorder %s131, %s133
    %p137 = scmp.eq.s32.totalorder %s13, 0
    %p138 = por %p136, %p137
    %p139 = scmp.ne.s32.totalorder %s131, %s133
    %p140 = scmp.eq.s32.totalorder %s18, 1
    %p141 = por %p139, %p140
    %p142 = scmp.ne.s32.totalorder %s133, %s134
    %p143 = scmp.eq.s32.totalorder %s18, 0
    %p144 = por %p142, %p143
    %p145 = scmp.ne.s32.totalorder %s133, %s134
    %p146 = scmp.eq.s32.totalorder %s19, 1
    %p147 = por %p145, %p146
    %p149 = scmp.ne.s32.totalorder %s134, %s148
    %p150 = scmp.eq.s32.totalorder %s19, 0
    %p151 = por %p149, %p150
    %s152 = ssub.s32 %s13, %s20
    %p153 = scmp.eq.s32.totalorder %s152, 0
    %s155 = sadd.s32 %s154, 1
    %s156 = scalar_select %p153, %s154, %s155
    %p159 = pneg %p153
    %p160 = scmp.eq.s32.totalorder %s13, 1
    %p161 = por %p159, %p160
    %p162 = scmp.ne.s32.totalorder %s154, %s157
    %p163 = scmp.eq.s32.totalorder %s13, 0
    %p164 = por %p162, %p163
    %p165 = scmp.ne.s32.totalorder %s154, %s157
    %p166 = scmp.eq.s32.totalorder %s18, 1
    %p167 = por %p165, %p166
    %p168 = scmp.ne.s32.totalorder %s157, %s158
    %p169 = scmp.eq.s32.totalorder %s18, 0
    %p170 = por %p168, %p169
    %p171 = scmp.ne.s32.totalorder %s157, %s158
    %p172 = scmp.eq.s32.totalorder %s19, 1
    %p173 = por %p171, %p172
    %p175 = scmp.ne.s32.totalorder %s158, %s174
    %p176 = scmp.eq.s32.totalorder %s19, 0
    %p177 = por %p175, %p176
    %s178 = ssub.s32 %s13, %s20
    %p179 = scmp.eq.s32.totalorder %s178, 0
    %s181 = sadd.s32 %s180, 1
    %s182 = scalar_select %p179, %s180, %s181
    %p185 = pneg %p179
    %p186 = scmp.eq.s32.totalorder %s13, 1
    %p187 = por %p185, %p186
    %p188 = scmp.ne.s32.totalorder %s180, %s183
    %p189 = scmp.eq.s32.totalorder %s13, 0
    %p190 = por %p188, %p189
    %p191 = scmp.ne.s32.totalorder %s180, %s183
    %p192 = scmp.eq.s32.totalorder %s18, 1
    %p193 = por %p191, %p192
    %p194 = scmp.ne.s32.totalorder %s183, %s184
    %p195 = scmp.eq.s32.totalorder %s18, 0
    %p196 = por %p194, %p195
    %p197 = scmp.ne.s32.totalorder %s183, %s184
    %p198 = scmp.eq.s32.totalorder %s19, 1
    %p199 = por %p197, %p198
    %p201 = scmp.ne.s32.totalorder %s184, %s200
    %p202 = scmp.eq.s32.totalorder %s19, 0
    %p203 = por %p201, %p202
    %p204 = scmp.le.s32.totalorder 1, %s13
    %p205 = scmp.lt.s32.totalorder %s13, 3
    %p206 = pnand %p204, %p205
    %p207 = pneg %p206
    // Predicated region
    $region9: #{gat_forward.3} parent=5 // pred_check
      _
    $region10: #{gat_forward.3} parent=5 // pred_check_branch
      %209 = sbr.rel (%p206) target = $region12
    $region11: #{gat_forward.3} parent=5 // pred_region
      %s210 = ssub.s32 %s13, 1
      // Predicated region
      $region13: #{gat_forward.3} parent=11 // pred_check
        %p211 = pneg %p60
      $region14: #{gat_forward.3} parent=11 // pred_check_branch
        %213 = sbr.rel (%p211) target = $region16
      $region15: #{gat_forward.3} parent=11 // pred_region
        _
      $region16: #{gat_forward.3} parent=11 // pred_fallthru
        _
      // Predicated region
      $region17: #{gat_forward.3} parent=11 // pred_check
        %p214 = pneg %p81
      $region18: #{gat_forward.3} parent=11 // pred_check_branch
        %216 = sbr.rel (%p214) target = $region20
      $region19: #{gat_forward.3} parent=11 // pred_region
        _
      $region20: #{gat_forward.3} parent=11 // pred_fallthru
        _
      // Predicated region
      $region21: #{gat_forward.3} parent=11 // pred_check
        %p217 = pneg %p102
      $region22: #{gat_forward.3} parent=11 // pred_check_branch
        %219 = sbr.rel (%p217) target = $region24
      $region23: #{gat_forward.3} parent=11 // pred_region
        _
      $region24: #{gat_forward.3} parent=11 // pred_fallthru
        _
      // Predicated region
      $region25: #{gat_forward.3} parent=11 // pred_check
        %p220 = pneg %p123
      $region26: #{gat_forward.3} parent=11 // pred_check_branch
        %222 = sbr.rel (%p220) target = $region28
      $region27: #{gat_forward.3} parent=11 // pred_region
        _
      $region28: #{gat_forward.3} parent=11 // pred_fallthru
        _
      // Predicated region
      $region29: #{gat_forward.3} parent=11 // pred_check
        %p223 = pneg %p144
      $region30: #{gat_forward.3} parent=11 // pred_check_branch
        %225 = sbr.rel (%p223) target = $region32
      $region31: #{gat_forward.3} parent=11 // pred_region
        _
      $region32: #{gat_forward.3} parent=11 // pred_fallthru
        _
    $region12: #{gat_forward.3} parent=5 // pred_fallthru
      _
    %p226 = scmp.lt.s32.totalorder %s13, 2
    // Predicated region
    $region33: #{gat_forward.3} parent=5 // pred_check
      %p227 = pneg %p226
    $region34: #{gat_forward.3} parent=5 // pred_check_branch
      %229 = sbr.rel (%p227) target = $region36
    $region35: #{gat_forward.3} parent=5 // pred_region
      // Predicated region
      $region37: #{gat_forward.3} parent=35 // pred_check
        %p230 = pneg %p33
      $region38: #{gat_forward.3} parent=35 // pred_check_branch
        %232 = sbr.rel (%p230) target = $region40
      $region39: #{gat_forward.3} parent=35 // pred_region
        %p233 = scmp.lt.s32.totalorder %s13, 1
        %s234 = scalar_select %p233, %s13, 1
        %s235 = smul.addr %s234, 8
        %s236 = scalar_lea.vmem %s0, %s235
      $region40: #{gat_forward.3} parent=35 // pred_fallthru
        _
      // Predicated region
      $region41: #{gat_forward.3} parent=35 // pred_check
        %p237 = pneg %p164
      $region42: #{gat_forward.3} parent=35 // pred_check_branch
        %239 = sbr.rel (%p237) target = $region44
      $region43: #{gat_forward.3} parent=35 // pred_region
        %p240 = scmp.lt.s32.totalorder %s13, 1
        %s241 = scalar_select %p240, %s13, 1
        %s242 = smul.addr %s241, 8
        %s243 = scalar_lea.vmem %s6, %s242
      $region44: #{gat_forward.3} parent=35 // pred_fallthru
        _
    $region36: #{gat_forward.3} parent=5 // pred_fallthru
      _
    %p244 = scmp.le.s32.totalorder 1, %s13
    %p245 = scmp.lt.s32.totalorder %s13, 3
    %p246 = pnand %p244, %p245
    %p247 = pneg %p246
    // Predicated region
    $region45: #{gat_forward.3} parent=5 // pred_check
      _
    $region46: #{gat_forward.3} parent=5 // pred_check_branch
      %249 = sbr.rel (%p246) target = $region48
    $region47: #{gat_forward.3} parent=5 // pred_region
      %s250 = ssub.s32 %s13, 1
      %p251 = scmp.lt.s32.totalorder %s18, 1
      %s252 = scalar_select %p251, %s18, 1
      %s253 = smul.addr %s252, 8
      %s254 = scalar_lea.vmem %s0, %s253
      %p255 = pneg %p39
      %p256 = pneg %p36
      %p257 = pneg %p60
      %p258 = pneg %p57
      %p259 = pneg %p81
      %p260 = pneg %p78
      %p261 = pneg %p102
      %p262 = pneg %p99
      %p263 = pneg %p123
      %p264 = pneg %p120
      %p265 = pneg %p144
      %p266 = pneg %p141
      %p267 = scmp.lt.s32.totalorder %s18, 1
      %s268 = scalar_select %p267, %s18, 1
      %s269 = smul.addr %s268, 8
      %s270 = scalar_lea.vmem %s6, %s269
      %p271 = pneg %p170
      %p272 = pneg %p167
      %p273 = pneg %p196
      %p274 = pneg %p193
      %p275 = scmp.lt.s32.totalorder %s18, 1
      %s276 = scalar_select %p275, %s18, 1
      %s277 = smul.addr %s276, 8
      %s278 = scalar_lea.vmem %s7, %s277
      %p279 = scmp.lt.s32.totalorder %s18, 1
      %s280 = scalar_select %p279, %s18, 1
      %s281 = smul.addr %s280, 8
      %s282 = scalar_lea.vmem %s0, %s281
      %p283 = scmp.lt.s32.totalorder %s18, 1
      %s284 = scalar_select %p283, %s18, 1
      %s285 = smul.addr %s284, 8
      %s286 = scalar_lea.vmem %s6, %s285
      %p287 = scmp.lt.s32.totalorder %s18, 1
      %s288 = scalar_select %p287, %s18, 1
      %s289 = smul.addr %s288, 8
      %s290 = scalar_lea.vmem %s7, %s289
      %v292 = vld [vmem:[%s282] sm:$0xff]
      %v293 = vpack.c.bf16 %v292, %v292
      %v294 = vld [vmem:[%s1] sm:$0xff]
      %v295 = vld [vmem:[%s1 + $0x8] sm:$0xff]
      %v296 = vpack.c.bf16 %v295, %v294
      %v297 = vld [vmem:[%s2] sm:$0xff]
      %v298 = vpack.c.bf16 %v297, %v297
      %v299 = vld [vmem:[%s3] sm:$0xff]
      %v300 = vpack.c.bf16 %v299, %v299
      %v301 = vld [vmem:[%s4] sm:$0xff]
      %v302 = vpack.c.bf16 %v301, %v301
      %v303 = vld [vmem:[%s5] sm:$0xf]
      %v304 = vpack.c.bf16 %v303, %v303
      %v305 = vld [vmem:[%s286] sm:$0xff]
      %vm306 = vcmask 64512
      %v308 = vsel %vm306, %v296, 0
      %vm310 = vcmask 1043456
      %v312 = vsel %vm310, %v300, 0
      %314 = vmatpush.bf16.msra.mxu0 0
      %315 = vmatpush.bf16.msra.mxu0 0
      %316 = vmatpush.bf16.msra.mxu0 0
      %317 = vmatpush.bf16.msra.mxu0 0
      %318 = vmatpush.bf16.msra.mxu0 0
      %319 = vmatpush.bf16.msra.mxu0 0
      %320 = vmatpush.bf16.msra.mxu0 0
      %321 = vmatpush.bf16.msra.mxu0 %v312
      %322 = vmatmul.bf16.gmra.mxu0 %v308
      %v323 = vpop.f32.mrf.mxu0
      %v324 = vadd.f32 0.0, %v323
      %v325 = vpop.f32.mrf.mxu0
      %v326 = vadd.f32 0.0, %v325
      %327 = vdwg.mxu0
      %v328 = vpack.c.bf16 %v324, %v324
      %v329 = vpack.c.bf16 %v326, %v326
      %v331 = vsel %vm306, %v293, 0
      %v334 = vsel %vm310, %v302, 0
      %336 = vmatpush.bf16.msra.mxu0 0
      %337 = vmatpush.bf16.msra.mxu0 0
      %338 = vmatpush.bf16.msra.mxu0 0
      %339 = vmatpush.bf16.msra.mxu0 0
      %340 = vmatpush.bf16.msra.mxu0 0
      %341 = vmatpush.bf16.msra.mxu0 0
      %342 = vmatpush.bf16.msra.mxu0 0
      %343 = vmatpush.bf16.msra.mxu0 %v334
      %344 = vmatmul.bf16.gmra.mxu0 %v331
      %v345 = vpop.f32.mrf.mxu0
      %v346 = vadd.f32 0.0, %v345
      %v347 = vpop.f32.mrf.mxu0
      %348 = vdwg.mxu0
      %v350 = vsel %vm306, %v304, 0
      %v353 = vsel %vm310, %v298, 0
      %355 = vmatpush.bf16.msra.mxu0 0
      %356 = vmatpush.bf16.msra.mxu0 0
      %357 = vmatpush.bf16.msra.mxu0 0
      %358 = vmatpush.bf16.msra.mxu0 0
      %359 = vmatpush.bf16.msra.mxu0 0
      %360 = vmatpush.bf16.msra.mxu0 0
      %361 = vmatpush.bf16.msra.mxu0 0
      %362 = vmatpush.bf16.msra.mxu0 %v353
      %363 = vmatmul.bf16.gmra.mxu0 %v350
      %v364 = vpop.f32.mrf.mxu0
      %v365 = vadd.f32 0.0, %v364
      %v366 = vpop.f32.mrf.mxu0
      %367 = vdwg.mxu0
      %369 = vset.pattern.permute.xlu0 0
      %370 = vperm.xlu0 %369, %v346
      %v371 = vpop.permute.xlu0 %370
      %v373 = vperm.slane %v365, 0
      %v374 = vadd.f32 %v371, %v373
      %vm375 = vcmp.gt.f32.partialorder %v374, 0.0
      %v376 = vmul.f32 %v374, 0.2
      %v377 = vsel %vm375, %v374, %v376
      %v378 = vadd.f32 %v377, %v305
      %vm379 = vcmask 130048
      %v380 = vsel %vm379, %v378, -inf
      %381 = vmax.xlane.f32.xlu0 %v380
      %v382 = vpop.xlane.xlu0 %381
      %v383 = vsub.f32 %v378, %v382
      %v384 = vmul.f32 %v383, 1.442695
      %v385 = vpow.pop %v384
      %v386 = vsel %vm379, %v385, 0.0
      %387 = vadd.xlane.f32.xlu0 %v386
      %v388 = vpop.xlane.xlu0 %387
      %v389 = vrcp.pop %v388
      %v390 = vmul.f32 %v385, %v389
      %v391 = vpack.c.bf16 %v390, %v390
      %v394 = vunpack.c.l.b16 %v328
      %v395 = vunpack.c.l.b16 %v329
      %v396 = vpack.c.b16 %v395, %v394
      %v399 = vsel %vm379, %v391, 0
      %401 = vmatpush.bf16.msra.mxu0 0
      %402 = vmatpush.bf16.msra.mxu0 0
      %403 = vmatpush.bf16.msra.mxu0 0
      %404 = vmatpush.bf16.msra.mxu0 0
      %405 = vmatpush.bf16.msra.mxu0 0
      %406 = vmatpush.bf16.msra.mxu0 0
      %407 = vmatpush.bf16.msra.mxu0 0
      %408 = vmatpush.bf16.msra.mxu0 %v396
      %409 = vmatmul.bf16.gmra.mxu0 %v399
      %v410 = vpop.f32.mrf.mxu0
      %v411 = vadd.f32 0.0, %v410
      %v412 = vpop.f32.mrf.mxu0
      %413 = vdwg.mxu0
      %414 = vset.pattern.permute.xlu0 1
      %415 = vperm.xlu0 %414, %v346
      %v416 = vpop.permute.xlu0 %415
      %v418 = vperm.slane %v365, 1
      %v419 = vadd.f32 %v416, %v418
      %vm420 = vcmp.gt.f32.partialorder %v419, 0.0
      %v421 = vmul.f32 %v419, 0.2
      %v422 = vsel %vm420, %v419, %v421
      %v423 = vadd.f32 %v422, %v305
      %v424 = vsel %vm379, %v423, -inf
      %425 = vmax.xlane.f32.xlu0 %v424
      %v426 = vpop.xlane.xlu0 %425
      %v427 = vsub.f32 %v423, %v426
      %v428 = vmul.f32 %v427, 1.442695
      %v429 = vpow.pop %v428
      %v430 = vsel %vm379, %v429, 0.0
      %431 = vadd.xlane.f32.xlu0 %v430
      %v432 = vpop.xlane.xlu0 %431
      %v433 = vrcp.pop %v432
      %v434 = vmul.f32 %v429, %v433
      %v435 = vpack.c.bf16 %v434, %v434
      %436 = vrot.lane.b32.xlu0 %v396, 120
      %v437 = vpop.permute.xlu0 %436
      %v440 = vsel %vm379, %v435, 0
      %442 = vmatpush.bf16.msra.mxu0 0
      %443 = vmatpush.bf16.msra.mxu0 0
      %444 = vmatpush.bf16.msra.mxu0 0
      %445 = vmatpush.bf16.msra.mxu0 0
      %446 = vmatpush.bf16.msra.mxu0 0
      %447 = vmatpush.bf16.msra.mxu0 0
      %448 = vmatpush.bf16.msra.mxu0 0
      %449 = vmatpush.bf16.msra.mxu0 %v437
      %450 = vmatmul.bf16.gmra.mxu0 %v440
      %v451 = vpop.f32.mrf.mxu0
      %v452 = vadd.f32 0.0, %v451
      %v453 = vpop.f32.mrf.mxu0
      %454 = vdwg.mxu0
      %455 = vset.pattern.permute.xlu0 2
      %456 = vperm.xlu0 %455, %v346
      %v457 = vpop.permute.xlu0 %456
      %v459 = vperm.slane %v365, 2
      %v460 = vadd.f32 %v457, %v459
      %vm461 = vcmp.gt.f32.partialorder %v460, 0.0
      %v462 = vmul.f32 %v460, 0.2
      %v463 = vsel %vm461, %v460, %v462
      %v464 = vadd.f32 %v463, %v305
      %v465 = vsel %vm379, %v464, -inf
      %466 = vmax.xlane.f32.xlu0 %v465
      %v467 = vpop.xlane.xlu0 %466
      %v468 = vsub.f32 %v464, %v467
      %v469 = vmul.f32 %v468, 1.442695
      %v470 = vpow.pop %v469
      %v471 = vsel %vm379, %v470, 0.0
      %472 = vadd.xlane.f32.xlu0 %v471
      %v473 = vpop.xlane.xlu0 %472
      %v474 = vrcp.pop %v473
      %v475 = vmul.f32 %v470, %v474
      %v476 = vpack.c.bf16 %v475, %v475
      %477 = vrot.lane.b32.xlu0 %v396, 112
      %v478 = vpop.permute.xlu0 %477
      %v481 = vsel %vm379, %v476, 0
      %483 = vmatpush.bf16.msra.mxu0 0
      %484 = vmatpush.bf16.msra.mxu0 0
      %485 = vmatpush.bf16.msra.mxu0 0
      %486 = vmatpush.bf16.msra.mxu0 0
      %487 = vmatpush.bf16.msra.mxu0 0
      %488 = vmatpush.bf16.msra.mxu0 0
      %489 = vmatpush.bf16.msra.mxu0 0
      %490 = vmatpush.bf16.msra.mxu0 %v478
      %491 = vmatmul.bf16.gmra.mxu0 %v481
      %v492 = vpop.f32.mrf.mxu0
      %v493 = vadd.f32 0.0, %v492
      %v494 = vpop.f32.mrf.mxu0
      %495 = vdwg.mxu0
      %496 = vset.pattern.permute.xlu0 3
      %497 = vperm.xlu0 %496, %v346
      %v498 = vpop.permute.xlu0 %497
      %v500 = vperm.slane %v365, 3
      %v501 = vadd.f32 %v498, %v500
      %vm502 = vcmp.gt.f32.partialorder %v501, 0.0
      %v503 = vmul.f32 %v501, 0.2
      %v504 = vsel %vm502, %v501, %v503
      %v505 = vadd.f32 %v504, %v305
      %v506 = vsel %vm379, %v505, -inf
      %507 = vmax.xlane.f32.xlu0 %v506
      %v508 = vpop.xlane.xlu0 %507
      %v509 = vsub.f32 %v505, %v508
      %v510 = vmul.f32 %v509, 1.442695
      %v511 = vpow.pop %v510
      %v512 = vsel %vm379, %v511, 0.0
      %513 = vadd.xlane.f32.xlu0 %v512
      %v514 = vpop.xlane.xlu0 %513
      %v515 = vrcp.pop %v514
      %v516 = vmul.f32 %v511, %v515
      %v517 = vpack.c.bf16 %v516, %v516
      %518 = vrot.lane.b32.xlu0 %v396, 104
      %v519 = vpop.permute.xlu0 %518
      %v522 = vsel %vm379, %v517, 0
      %524 = vmatpush.bf16.msra.mxu0 0
      %525 = vmatpush.bf16.msra.mxu0 0
      %526 = vmatpush.bf16.msra.mxu0 0
      %527 = vmatpush.bf16.msra.mxu0 0
      %528 = vmatpush.bf16.msra.mxu0 0
      %529 = vmatpush.bf16.msra.mxu0 0
      %530 = vmatpush.bf16.msra.mxu0 0
      %531 = vmatpush.bf16.msra.mxu0 %v519
      %532 = vmatmul.bf16.gmra.mxu0 %v522
      %v533 = vpop.f32.mrf.mxu0
      %v534 = vadd.f32 0.0, %v533
      %v535 = vpop.f32.mrf.mxu0
      %536 = vdwg.mxu0
      %538 = vrot.lane.b32.xlu0 %v452, 8
      %v539 = vpop.permute.xlu0 %538
      %542 = vrot.lane.b32.xlu0 %v493, 16
      %v543 = vpop.permute.xlu0 %542
      %546 = vrot.lane.b32.xlu0 %v534, 24
      %v547 = vpop.permute.xlu0 %546
      %v549 = vsel %vm306, %v411, %v539
      %v550 = vsel %vm379, %v549, %v543
      %vm551 = vcmask 195584
      %v552 = vsel %vm551, %v550, %v547
      %vm553 = vcmp.gt.f32.partialorder %v552, 0.0
      %v554 = vmul.f32 %v552, 1.442695
      %v555 = vpow.pop %v554
      %v556 = vsub.f32 %v555, 1.0
      %v557 = vsel %vm553, %v552, %v556
      %vm558 = vcmask 261120
      %559 = vst.msk [vmem:[%s290] sm:$0xff] %vm558, %v557
      %p560 = scmp.lt.s32.totalorder %s18, 1
      %s561 = scalar_select %p560, %s18, 1
      %s562 = smul.addr %s561, 8
      %s563 = scalar_lea.vmem %s7, %s562
      // Predicated region
      $region49: #{gat_forward.3} parent=47 // pred_check
        %p564 = pneg %p193
      $region50: #{gat_forward.3} parent=47 // pred_check_branch
        %566 = sbr.rel (%p564) target = $region52
      $region51: #{gat_forward.3} parent=47 // pred_region
        _
      $region52: #{gat_forward.3} parent=47 // pred_fallthru
        _
    $region48: #{gat_forward.3} parent=5 // pred_fallthru
      _
    %p567 = scmp.le.s32.totalorder 2, %s13
    // Predicated region
    $region53: #{gat_forward.3} parent=5 // pred_check
      %p568 = pneg %p567
    $region54: #{gat_forward.3} parent=5 // pred_check_branch
      %570 = sbr.rel (%p568) target = $region56
    $region55: #{gat_forward.3} parent=5 // pred_region
      %s571 = ssub.s32 %s13, 2
      // Predicated region
      $region57: #{gat_forward.3} parent=55 // pred_check
        %p572 = pneg %p199
      $region58: #{gat_forward.3} parent=55 // pred_check_branch
        %574 = sbr.rel (%p572) target = $region60
      $region59: #{gat_forward.3} parent=55 // pred_region
        %p575 = scmp.lt.s32.totalorder %s19, 1
        %s576 = scalar_select %p575, %s19, 1
        %s577 = smul.addr %s576, 8
        %s578 = scalar_lea.vmem %s7, %s577
      $region60: #{gat_forward.3} parent=55 // pred_fallthru
        _
    $region56: #{gat_forward.3} parent=5 // pred_fallthru
      _
  $region6: #{gat_forward.3} parent=0 // loop_footer
    %s17 = sadd.s32 1, %s13
  $region7: #{gat_forward.3} parent=0 // loop_footer_branch
    %12 = sbr.rel target = $region3
  $region8: #{gat_forward.3} parent=0 // loop_exit
    _

</llo_original>
